<compile_context>
chip_gen: v7x
topology: tpu7x:2x2x1
jax: 0.10.0
libtpu: 0.0.40
codegen_flags: <defaults>
</compile_context>

<pallas_src>
import functools

import jax
import jax.numpy as jnp
import numpy as np
from jax import lax
from jax.experimental import pallas as pl
from jax.experimental.pallas import tpu as pltpu

HIDDEN = 128
LANES = 128
SUBLANES = 8


def _round_up(x, m):
    return ((x + m - 1) // m) * m


def critic_kernel(x_ref, w1_ref, b1_ref, w2_ref, b2_ref, w3_ref, b3_ref, o_ref,
                  *, n_chunks):
    tb = x_ref.shape[0]
    chunk = tb // n_chunks
    rows_out = chunk // LANES                     # output slab rows produced per chunk

    # Weights / biases are VMEM-resident (constant index maps); load once per tile.
    w1 = w1_ref[...]                              # (D, 128)   bf16
    b1 = b1_ref[...]                              # (1, 128)   f32
    w2 = w2_ref[...]                              # (128, 128) bf16
    b2 = b2_ref[...]                              # (1, 128)   f32
    w3 = w3_ref[...]                              # (1, 128)   f32
    b3 = b3_ref[...]                              # (1, 1)     f32

    def body(j, carry):
        row0 = j * chunk
        out0 = j * rows_out
        if not isinstance(row0, int):             # dynamic sub-chunk start: alignment hints
            row0 = pl.multiple_of(row0, LANES)
            out0 = pl.multiple_of(out0, SUBLANES)

        # In-kernel f32 -> bf16 cast of the streamed state (no extra wrapper HBM pass).
        x = x_ref[pl.ds(row0, chunk), :].astype(jnp.bfloat16)          # (chunk, D)

        # Layer 1: Linear(D, 128) + ReLU   (bf16 MXU matmul, f32 accumulate)
        h1 = jnp.dot(x, w1, preferred_element_type=jnp.float32) + b1
        h1 = jnp.maximum(h1, 0.0)

        # Layer 2: Linear(128, 128) + ReLU
        h2 = jnp.dot(h1.astype(jnp.bfloat16), w2,
                     preferred_element_type=jnp.float32) + b2
        h2 = jnp.maximum(h2, 0.0)                                       # (chunk, 128) f32

        # Layer 3: Linear(128, 1) as VPU multiply + XLU lane reduce (skip degenerate
        # N=1 MXU op).  Lane-dense slab: slab[r, l] <-> chunk-local batch row r*128 + l.
        prod = h2 * w3                                                  # VPU
        v = jnp.sum(prod.reshape(rows_out, LANES, HIDDEN), axis=-1)     # XLU
        o_ref[pl.ds(out0, rows_out), :] = (v + b3).astype(o_ref.dtype)
        return carry

    if n_chunks == 1:
        body(0, 0)
    else:
        # Unrolled so chunk j+1's MXU work interleaves with chunk j's XLU reduce.
        lax.fori_loop(0, n_chunks, body, 0, unroll=True)


def critic_forward(state, params, *, tb=None):
    """state: [B, state_dim] f32 -> value: [B, 1] f32"""
    w1, b1, w2, b2, w3, b3 = params
    B, D = state.shape

    # Batch-tile selection: amortize grid-step overhead, keep >= 2 grid steps when B is
    # large (v7x megacore), don't over-pad small RL eval batches.
    if tb is None:
        target = _round_up(max(pl.cdiv(B, 2), 1), SUBLANES * LANES)
        tb = SUBLANES * LANES
        while tb < target and tb < 8192:
            tb *= 2
    assert tb % (SUBLANES * LANES) == 0
    nb = pl.cdiv(B, tb)

    # In-kernel sub-chunking for MXU/XLU overlap; keep each chunk a multiple of 1024 rows
    # so the dynamic output-slab stores stay sublane-aligned.
    n_chunks = 1
    while n_chunks < 4 and (tb // (2 * n_chunks)) % (SUBLANES * LANES) == 0:
        n_chunks *= 2
    chunk = tb // n_chunks

    # Small (non-B-scaled) weights cast in the wrapper; the state streams as f32.
    w1b = w1.astype(jnp.bfloat16)
    w2b = w2.astype(jnp.bfloat16)
    w3_row = w3.reshape(1, HIDDEN).astype(jnp.float32)
    b3_2d = b3.reshape(1, 1).astype(jnp.float32)

    rows_per_block = tb // LANES
    out_rows = nb * rows_per_block               # padded output slab (4 B per batch row)

    # Derived VMEM budget (input block is lane-padded to 128 in VMEM).
    d_pad = _round_up(D, LANES)
    vmem_bytes = (
        2 * tb * d_pad * 4                       # double-buffered f32 state block
        + 2 * rows_per_block * LANES * 4         # double-buffered output slab block
        + chunk * LANES * 24                     # per-chunk temps (h1/h2 f32, bf16 copies, prod)
        + 2 * (d_pad * HIDDEN * 2 + HIDDEN * HIDDEN * 2 + 4 * HIDDEN * 4)  # weights/biases
        + (8 << 20)                              # compiler scratch headroom
    )
    vmem_limit = int(min(max(vmem_bytes, 24 << 20), 56 << 20))   # <= v7x 64 MiB physical

    flops = 2 * B * (D * HIDDEN + HIDDEN * HIDDEN + HIDDEN)
    bytes_accessed = int(B * D * 4 + B * 4
                         + (D * HIDDEN + HIDDEN * HIDDEN) * 2 + HIDDEN * 12)

    const = lambda shape: pl.BlockSpec(shape, lambda i: tuple(0 for _ in shape))

    out = pl.pallas_call(
        functools.partial(critic_kernel, n_chunks=n_chunks),
        out_shape=jax.ShapeDtypeStruct((out_rows, LANES), jnp.float32),
        grid=(nb,),
        in_specs=[
            pl.BlockSpec((tb, D), lambda i: (i, 0)),      # state: streamed; partial tail OK
            const(w1b.shape), const(b1.shape),            # weights: VMEM-resident
            const(w2b.shape), const(b2.shape),
            const(w3_row.shape), const(b3_2d.shape),
        ],
        out_specs=pl.BlockSpec((rows_per_block, LANES), lambda i: (i, 0)),
        compiler_params=pltpu.CompilerParams(
            dimension_semantics=("parallel",),            # megacore sharding when nb >= 2
            vmem_limit_bytes=vmem_limit,
        ),
        cost_estimate=pl.CostEstimate(
            flops=flops, transcendentals=0, bytes_accessed=bytes_accessed),
    )(state, w1b, b1, w2b, b2, w3_row, b3_2d)

    # Slab row r, lane l  <->  batch row r*128 + l  ->  flatten and trim padded tail rows.
    return out.reshape(out_rows * LANES, 1)[:B]


def init_params(key, state_dim):
    """Deterministic init mirroring PyTorch nn.Linear default:
    U(-1/sqrt(fan_in), 1/sqrt(fan_in)) for both weight and bias."""
    dims = [(state_dim, HIDDEN), (HIDDEN, HIDDEN), (HIDDEN, 1)]
    params = []
    for (fan_in, fan_out) in dims:
        key, kw, kb = jax.random.split(key, 3)
        bound = 1.0 / np.sqrt(fan_in)
        w = jax.random.uniform(kw, (fan_in, fan_out), jnp.float32, -bound, bound)
        b = jax.random.uniform(kb, (1, fan_out), jnp.float32, -bound, bound)
        params += [w, b]
    return tuple(params)


def critic_reference(state, params):
    w1, b1, w2, b2, w3, b3 = params
    h1 = jnp.maximum(state @ w1 + b1, 0.0)
    h2 = jnp.maximum(h1 @ w2 + b2, 0.0)
    return h2 @ w3 + b3


if __name__ == "__main__":
    key = jax.random.PRNGKey(0)
    B, state_dim = 8, 32

    key, kx = jax.random.split(key)
    state = jax.random.normal(kx, (B, state_dim), jnp.float32)
    params = init_params(key, state_dim)

    out = critic_forward(state, params)
    out = jax.block_until_ready(out)

    ref = critic_reference(state, params)
    assert out.shape == (B, 1)
    # bf16 weight/activation streaming (f32 accumulation) -> loose tolerance.
    np.testing.assert_allclose(np.asarray(out), np.asarray(ref), rtol=3e-2, atol=3e-2)

    print("KERNEL_OK")
</pallas_src>

<mosaic_0001>
module attributes {stable_mosaic.version = 11 : i64} {
  func.func @critic_kernel(%arg0: i32, %arg1: memref<1024x32xf32, #tpu.memory_space<vmem>>, %arg2: memref<32x128xbf16, #tpu.memory_space<vmem>>, %arg3: memref<1x128xf32, #tpu.memory_space<vmem>>, %arg4: memref<128x128xbf16, #tpu.memory_space<vmem>>, %arg5: memref<1x128xf32, #tpu.memory_space<vmem>>, %arg6: memref<1x128xf32, #tpu.memory_space<vmem>>, %arg7: memref<1x1xf32, #tpu.memory_space<vmem>>, %arg8: memref<8x128xf32, #tpu.memory_space<vmem>>) attributes {dimension_semantics = [#tpu.dimension_semantics<parallel>], iteration_bounds = array<i64: 1>, scalar_prefetch = 0 : i64, scratch_operands = 0 : i64, tpu.core_type = #tpu.core_type<tc>, window_params = [{transform_indices = @transform_0, window_bounds = array<i64: 1024, 32>}, {pipeline_mode = #tpu.pipeline_mode<synchronous>, transform_indices = @transform_1, window_bounds = array<i64: 32, 128>}, {pipeline_mode = #tpu.pipeline_mode<synchronous>, transform_indices = @transform_2, window_bounds = array<i64: 1, 128>}, {pipeline_mode = #tpu.pipeline_mode<synchronous>, transform_indices = @transform_3, window_bounds = array<i64: 128, 128>}, {pipeline_mode = #tpu.pipeline_mode<synchronous>, transform_indices = @transform_4, window_bounds = array<i64: 1, 128>}, {pipeline_mode = #tpu.pipeline_mode<synchronous>, transform_indices = @transform_5, window_bounds = array<i64: 1, 128>}, {pipeline_mode = #tpu.pipeline_mode<synchronous>, transform_indices = @transform_6, window_bounds = array<i64: 1, 1>}, {transform_indices = @transform_7, window_bounds = array<i64: 8, 128>}]} {
    %c0 = arith.constant 0 : index
    %c0_0 = arith.constant 0 : index
    %0 = vector.load %arg2[%c0, %c0_0] : memref<32x128xbf16, #tpu.memory_space<vmem>>, vector<32x128xbf16>
    %c0_1 = arith.constant 0 : index
    %c0_2 = arith.constant 0 : index
    %1 = vector.load %arg3[%c0_1, %c0_2] : memref<1x128xf32, #tpu.memory_space<vmem>>, vector<1x128xf32>
    %c0_3 = arith.constant 0 : index
    %c0_4 = arith.constant 0 : index
    %2 = vector.load %arg4[%c0_3, %c0_4] : memref<128x128xbf16, #tpu.memory_space<vmem>>, vector<128x128xbf16>
    %c0_5 = arith.constant 0 : index
    %c0_6 = arith.constant 0 : index
    %3 = vector.load %arg5[%c0_5, %c0_6] : memref<1x128xf32, #tpu.memory_space<vmem>>, vector<1x128xf32>
    %c0_7 = arith.constant 0 : index
    %c0_8 = arith.constant 0 : index
    %4 = vector.load %arg6[%c0_7, %c0_8] : memref<1x128xf32, #tpu.memory_space<vmem>>, vector<1x128xf32>
    %c0_9 = arith.constant 0 : index
    %c0_10 = arith.constant 0 : index
    %5 = vector.load %arg7[%c0_9, %c0_10] : memref<1x1xf32, #tpu.memory_space<vmem>>, vector<1x1xf32>
    %c0_11 = arith.constant 0 : index
    %c0_12 = arith.constant 0 : index
    %6 = vector.load %arg1[%c0_11, %c0_12] : memref<1024x32xf32, #tpu.memory_space<vmem>>, vector<1024x32xf32>
    %7 = arith.truncf %6 : vector<1024x32xf32> to vector<1024x32xbf16>
    %cst = arith.constant dense<0.000000e+00> : vector<1024x128xf32>
    %8 = tpu.matmul %7, %0, %cst {dimension_numbers = #tpu.dot_dimension_numbers<[1], [0], [0], [1], [0, 0, 1, 1], [], []>} : vector<1024x32xbf16>, vector<32x128xbf16>, vector<1024x128xf32> -> vector<1024x128xf32>
    %9 = vector.broadcast %1 : vector<1x128xf32> to vector<1024x128xf32>
    %10 = arith.addf %8, %9 : vector<1024x128xf32>
    %cst_13 = arith.constant 0.000000e+00 : f32
    %11 = vector.broadcast %cst_13 : f32 to vector<1024x128xf32>
    %12 = arith.maximumf %10, %11 : vector<1024x128xf32>
    %13 = arith.truncf %12 : vector<1024x128xf32> to vector<1024x128xbf16>
    %cst_14 = arith.constant dense<0.000000e+00> : vector<1024x128xf32>
    %14 = tpu.matmul %13, %2, %cst_14 {dimension_numbers = #tpu.dot_dimension_numbers<[1], [0], [0], [1], [0, 0, 1, 1], [], []>} : vector<1024x128xbf16>, vector<128x128xbf16>, vector<1024x128xf32> -> vector<1024x128xf32>
    %15 = vector.broadcast %3 : vector<1x128xf32> to vector<1024x128xf32>
    %16 = arith.addf %14, %15 : vector<1024x128xf32>
    %cst_15 = arith.constant 0.000000e+00 : f32
    %17 = vector.broadcast %cst_15 : f32 to vector<1024x128xf32>
    %18 = arith.maximumf %16, %17 : vector<1024x128xf32>
    %19 = vector.broadcast %4 : vector<1x128xf32> to vector<1024x128xf32>
    %20 = arith.mulf %18, %19 : vector<1024x128xf32>
    %21 = vector.shape_cast %20 : vector<1024x128xf32> to vector<8x128x128xf32>
    %cst_16 = arith.constant dense<0.000000e+00> : vector<8x128xf32>
    %22 = vector.multi_reduction <add>, %21, %cst_16 [2] : vector<8x128x128xf32> to vector<8x128xf32>
    %23 = vector.broadcast %5 : vector<1x1xf32> to vector<8x128xf32>
    %24 = arith.addf %22, %23 : vector<8x128xf32>
    %c0_17 = arith.constant 0 : index
    %c0_18 = arith.constant 0 : index
    %25 = vector.load %arg8[%c0_17, %c0_18] : memref<8x128xf32, #tpu.memory_space<vmem>>, vector<8x128xf32>
    tpu.vector_store %arg8[%c0_17, %c0_18], %24 {strides = array<i32>} : memref<8x128xf32, #tpu.memory_space<vmem>>, vector<8x128xf32>,
    return
  }
  func.func @transform_0(%arg0: i32) -> (i32, i32) {
    %c0_i32 = arith.constant 0 : i32
    %c0_i32_0 = arith.constant 0 : i32
    return %arg0, %c0_i32 : i32, i32
  }
  func.func @transform_1(%arg0: i32) -> (i32, i32) {
    %c0_i32 = arith.constant 0 : i32
    %c0_i32_0 = arith.constant 0 : i32
    %c0_i32_1 = arith.constant 0 : i32
    return %c0_i32, %c0_i32_0 : i32, i32
  }
  func.func @transform_2(%arg0: i32) -> (i32, i32) {
    %c0_i32 = arith.constant 0 : i32
    %c0_i32_0 = arith.constant 0 : i32
    %c0_i32_1 = arith.constant 0 : i32
    return %c0_i32, %c0_i32_0 : i32, i32
  }
  func.func @transform_3(%arg0: i32) -> (i32, i32) {
    %c0_i32 = arith.constant 0 : i32
    %c0_i32_0 = arith.constant 0 : i32
    %c0_i32_1 = arith.constant 0 : i32
    return %c0_i32, %c0_i32_0 : i32, i32
  }
  func.func @transform_4(%arg0: i32) -> (i32, i32) {
    %c0_i32 = arith.constant 0 : i32
    %c0_i32_0 = arith.constant 0 : i32
    %c0_i32_1 = arith.constant 0 : i32
    return %c0_i32, %c0_i32_0 : i32, i32
  }
  func.func @transform_5(%arg0: i32) -> (i32, i32) {
    %c0_i32 = arith.constant 0 : i32
    %c0_i32_0 = arith.constant 0 : i32
    %c0_i32_1 = arith.constant 0 : i32
    return %c0_i32, %c0_i32_0 : i32, i32
  }
  func.func @transform_6(%arg0: i32) -> (i32, i32) {
    %c0_i32 = arith.constant 0 : i32
    %c0_i32_0 = arith.constant 0 : i32
    %c0_i32_1 = arith.constant 0 : i32
    return %c0_i32, %c0_i32_0 : i32, i32
  }
  func.func @transform_7(%arg0: i32) -> (i32, i32) {
    %c0_i32 = arith.constant 0 : i32
    %c0_i32_0 = arith.constant 0 : i32
    return %arg0, %c0_i32 : i32, i32
  }
}

</mosaic_0001>

<llo_original>
// kernel: tpu_custom_call.1
$region0: #{tpu_custom_call.1}
  #allocation0 [shape = 'u32[]', space=smem, size = 0x4, offset = 0x4, fixed_abs, tag = 'smem constant byte address 0x4 - core index']
  #allocation1 [shape = 'u32[144,128]{1,0:T(1,128)}', space=vmem, size = 0x12000, scoped, tag = 'internal scratch']
  #allocation2 [shape = 'f32[1,1]{1,0:T(1,128)S(1)}', space=vmem, size = 0x200, scoped, tag = 'scoped memory for tpu_custom_call.1']
  %s0 = inlined_call_operand.hbm [shape: f32[8,32], index: 0, kind: input, shape index: {}]
  %s1 = inlined_call_operand.hbm [shape: bf16[32,128], index: 1, kind: input, shape index: {}]
  %s2 = inlined_call_operand.vmem [shape: f32[1,128], index: 2, kind: input, shape index: {}]
  %s3 = inlined_call_operand.hbm [shape: bf16[128,128], index: 3, kind: input, shape index: {}]
  %s4 = inlined_call_operand.vmem [shape: f32[1,128], index: 4, kind: input, shape index: {}]
  %s5 = inlined_call_operand.vmem [shape: f32[1,128], index: 5, kind: input, shape index: {}]
  %s6 = inlined_call_operand.<no memory space> [shape: f32[1,1], index: 6, kind: input, shape index: {}]
  %s7 = inlined_call_operand.hbm [shape: f32[8,128], index: 7, kind: output, shape index: {}]
  %s8 = sld [smem:[#allocation0]]
  $region50: #{tpu_custom_call.1} parent=0
    _
  %s10 = ssub.s32 1, %s8
  %s11 = scalar_select 0, %s10, %s8
  %v12 = vstv %s6
  %13 = vst [vmem:[#allocation2] sm:$0x1] %v12
  $region1: #{tpu_custom_call.1} parent=0
    #allocation3 [shape = 'u8[524288]{0}', space=vmem, size = 0x80000, scoped, tag = 'input window, operand 0, single buffered']
    #allocation4 [shape = 's32[1]{0}', space=sflag, size = 0x4, scoped, tag = 'scoped memory for tpu_custom_call.1']
    #allocation5 [shape = 's32[1]{0}', space=sflag, size = 0x4, scoped, tag = 'scoped memory for tpu_custom_call.1']
    #allocation6 [shape = 'u8[8192]{0}', space=vmem, size = 0x2000, scoped, tag = 'input window, operand 1, single buffered']
    #allocation7 [shape = 's32[1]{0}', space=sflag, size = 0x4, scoped, tag = 'scoped memory for tpu_custom_call.1']
    #allocation8 [shape = 'u8[32768]{0}', space=vmem, size = 0x8000, scoped, tag = 'input window, operand 3, single buffered']
    #allocation9 [shape = 'u8[4096]{0}', space=vmem, size = 0x1000, scoped, tag = 'output window, operand 0, single buffered']
    %14 = vsyncpa [#allocation4], 0
    %15 = vsyncpa [#allocation7], 0
    %16 = vsyncpa [#allocation5], 0
    // Predicated region
    $region2: #{tpu_custom_call.1} parent=1 // pred_check
      _
    $region3: #{tpu_custom_call.1} parent=1 // pred_check_branch
      %18 = sbr.rel (0) target = $region5
    $region4: #{tpu_custom_call.1} parent=1 // pred_region
      %s20 = ssub.s32 16384, 128
      %21 = vsyncadd [#allocation4], %s20
      %s22 = sshll.u32 [#allocation3], 4
      %s23 = int_to_ptr.vmem [resolvable:$true] %s22
      %28 = dma.hbm_to_vmem [thread:$0]  %s0, 128, %s23, [#allocation4], 128, 128, 8
    $region5: #{tpu_custom_call.1} parent=1 // pred_fallthru
      _
    // Predicated region
    $region6: #{tpu_custom_call.1} parent=1 // pred_check
      _
    $region7: #{tpu_custom_call.1} parent=1 // pred_check_branch
      %30 = sbr.rel (0) target = $region9
    $region8: #{tpu_custom_call.1} parent=1 // pred_region
      %s32 = ssub.s32 256, 256
      %33 = vsyncadd [#allocation7], %s32
      %s34 = sshll.u32 [#allocation6], 4
      %s35 = int_to_ptr.vmem [resolvable:$true] %s34
      %40 = dma.hbm_to_vmem [thread:$0]  %s1, 256, %s35, [#allocation7], 64, 64, 4
    $region9: #{tpu_custom_call.1} parent=1 // pred_fallthru
      _
    // Predicated region
    $region10: #{tpu_custom_call.1} parent=1 // pred_check
      _
    $region11: #{tpu_custom_call.1} parent=1 // pred_check_branch
      %42 = sbr.rel (0) target = $region13
    $region12: #{tpu_custom_call.1} parent=1 // pred_region
      _
    $region13: #{tpu_custom_call.1} parent=1 // pred_fallthru
      _
    // Predicated region
    $region14: #{tpu_custom_call.1} parent=1 // pred_check
      _
    $region15: #{tpu_custom_call.1} parent=1 // pred_check_branch
      %44 = sbr.rel (0) target = $region17
    $region16: #{tpu_custom_call.1} parent=1 // pred_region
      %s46 = ssub.s32 1024, 1024
      %47 = vsyncadd [#allocation7], %s46
      %s48 = sshll.u32 [#allocation8], 4
      %s49 = int_to_ptr.vmem [resolvable:$true] %s48
      %54 = dma.hbm_to_vmem [thread:$0]  %s3, 1024, %s49, [#allocation7], 64, 64, 4
    $region17: #{tpu_custom_call.1} parent=1 // pred_fallthru
      _
    // Predicated region
    $region18: #{tpu_custom_call.1} parent=1 // pred_check
      _
    $region19: #{tpu_custom_call.1} parent=1 // pred_check_branch
      %56 = sbr.rel (0) target = $region21
    $region20: #{tpu_custom_call.1} parent=1 // pred_region
      _
    $region21: #{tpu_custom_call.1} parent=1 // pred_fallthru
      _
    // Predicated region
    $region22: #{tpu_custom_call.1} parent=1 // pred_check
      _
    $region23: #{tpu_custom_call.1} parent=1 // pred_check_branch
      %58 = sbr.rel (0) target = $region25
    $region24: #{tpu_custom_call.1} parent=1 // pred_region
      _
    $region25: #{tpu_custom_call.1} parent=1 // pred_fallthru
      _
    // Predicated region
    $region26: #{tpu_custom_call.1} parent=1 // pred_check
      _
    $region27: #{tpu_custom_call.1} parent=1 // pred_check_branch
      %60 = sbr.rel (0) target = $region29
    $region28: #{tpu_custom_call.1} parent=1 // pred_region
      _
    $region29: #{tpu_custom_call.1} parent=1 // pred_fallthru
      _
    // Predicated region
    $region30: #{tpu_custom_call.1} parent=1 // pred_check
      _
    $region31: #{tpu_custom_call.1} parent=1 // pred_check_branch
      %62 = sbr.rel (0) target = $region33
    $region32: #{tpu_custom_call.1} parent=1 // pred_region
      %63 = dma.done [#allocation4], 16384
    $region33: #{tpu_custom_call.1} parent=1 // pred_fallthru
      _
    // Predicated region
    $region34: #{tpu_custom_call.1} parent=1 // pred_check
      _
    $region35: #{tpu_custom_call.1} parent=1 // pred_check_branch
      %65 = sbr.rel (0) target = $region37
    $region36: #{tpu_custom_call.1} parent=1 // pred_region
      %66 = dma.done [#allocation7], 256
    $region37: #{tpu_custom_call.1} parent=1 // pred_fallthru
      _
    // Predicated region
    $region38: #{tpu_custom_call.1} parent=1 // pred_check
      _
    $region39: #{tpu_custom_call.1} parent=1 // pred_check_branch
      %68 = sbr.rel (0) target = $region41
    $region40: #{tpu_custom_call.1} parent=1 // pred_region
      %69 = dma.done [#allocation7], 1024
    $region41: #{tpu_custom_call.1} parent=1 // pred_fallthru
      _
    %v71 = vld [vmem:[#allocation6] sm:$0xf]
    %v72 = vld [vmem:[#allocation6 + $0x4] sm:$0xf]
    %v73 = vld [vmem:[#allocation6 + $0x8] sm:$0xf]
    %v74 = vld [vmem:[#allocation6 + $0xc] sm:$0xf]
    %v75 = vld [vmem:[%s2] sm:$0x1]
    %v76 = vld [vmem:[#allocation8] sm:$0xf]
    %v77 = vld [vmem:[#allocation8 + $0x4] sm:$0xf]
    %v78 = vld [vmem:[#allocation8 + $0x8] sm:$0xf]
    %v79 = vld [vmem:[#allocation8 + $0xc] sm:$0xf]
    %v80 = vld [vmem:[#allocation8 + $0x10] sm:$0xf]
    %v81 = vld [vmem:[#allocation8 + $0x14] sm:$0xf]
    %v82 = vld [vmem:[#allocation8 + $0x18] sm:$0xf]
    %v83 = vld [vmem:[#allocation8 + $0x1c] sm:$0xf]
    %v84 = vld [vmem:[#allocation8 + $0x20] sm:$0xf]
    %v85 = vld [vmem:[#allocation8 + $0x24] sm:$0xf]
    %v86 = vld [vmem:[#allocation8 + $0x28] sm:$0xf]
    %v87 = vld [vmem:[#allocation8 + $0x2c] sm:$0xf]
    %v88 = vld [vmem:[#allocation8 + $0x30] sm:$0xf]
    %v89 = vld [vmem:[#allocation8 + $0x34] sm:$0xf]
    %v90 = vld [vmem:[#allocation8 + $0x38] sm:$0xf]
    %v91 = vld [vmem:[#allocation8 + $0x3c] sm:$0xf]
    %v92 = vld [vmem:[%s4] sm:$0x1]
    %v93 = vld [vmem:[%s5] sm:$0x1]
    %v94 = vld [vmem:[#allocation2] sm:$0x1]
    %v95 = vld [vmem:[#allocation3] sm:$0xff]
    %v96 = vld [vmem:[#allocation3 + $0x8] sm:$0xff]
    %v97 = vld [vmem:[#allocation3 + $0x10] sm:$0xff]
    %v98 = vld [vmem:[#allocation3 + $0x18] sm:$0xff]
    %v99 = vld [vmem:[#allocation3 + $0x20] sm:$0xff]
    %v100 = vld [vmem:[#allocation3 + $0x28] sm:$0xff]
    %v101 = vld [vmem:[#allocation3 + $0x30] sm:$0xff]
    %v102 = vld [vmem:[#allocation3 + $0x38] sm:$0xff]
    %v103 = vld [vmem:[#allocation3 + $0x40] sm:$0xff]
    %v104 = vld [vmem:[#allocation3 + $0x48] sm:$0xff]
    %v105 = vld [vmem:[#allocation3 + $0x50] sm:$0xff]
    %v106 = vld [vmem:[#allocation3 + $0x58] sm:$0xff]
    %v107 = vld [vmem:[#allocation3 + $0x60] sm:$0xff]
    %v108 = vld [vmem:[#allocation3 + $0x68] sm:$0xff]
    %v109 = vld [vmem:[#allocation3 + $0x70] sm:$0xff]
    %v110 = vld [vmem:[#allocation3 + $0x78] sm:$0xff]
    %v111 = vld [vmem:[#allocation3 + $0x80] sm:$0xff]
    %v112 = vld [vmem:[#allocation3 + $0x88] sm:$0xff]
    %v113 = vld [vmem:[#allocation3 + $0x90] sm:$0xff]
    %v114 = vld [vmem:[#allocation3 + $0x98] sm:$0xff]
    %v115 = vld [vmem:[#allocation3 + $0xa0] sm:$0xff]
    %v116 = vld [vmem:[#allocation3 + $0xa8] sm:$0xff]
    %v117 = vld [vmem:[#allocation3 + $0xb0] sm:$0xff]
    %v118 = vld [vmem:[#allocation3 + $0xb8] sm:$0xff]
    %v119 = vld [vmem:[#allocation3 + $0xc0] sm:$0xff]
    %v120 = vld [vmem:[#allocation3 + $0xc8] sm:$0xff]
    %v121 = vld [vmem:[#allocation3 + $0xd0] sm:$0xff]
    %v122 = vld [vmem:[#allocation3 + $0xd8] sm:$0xff]
    %v123 = vld [vmem:[#allocation3 + $0xe0] sm:$0xff]
    %v124 = vld [vmem:[#allocation3 + $0xe8] sm:$0xff]
    %v125 = vld [vmem:[#allocation3 + $0xf0] sm:$0xff]
    %v126 = vld [vmem:[#allocation3 + $0xf8] sm:$0xff]
    %v127 = vld [vmem:[#allocation3 + $0x100] sm:$0xff]
    %v128 = vld [vmem:[#allocation3 + $0x108] sm:$0xff]
    %v129 = vld [vmem:[#allocation3 + $0x110] sm:$0xff]
    %v130 = vld [vmem:[#allocation3 + $0x118] sm:$0xff]
    %v131 = vld [vmem:[#allocation3 + $0x120] sm:$0xff]
    %v132 = vld [vmem:[#allocation3 + $0x128] sm:$0xff]
    %v133 = vld [vmem:[#allocation3 + $0x130] sm:$0xff]
    %v134 = vld [vmem:[#allocation3 + $0x138] sm:$0xff]
    %v135 = vld [vmem:[#allocation3 + $0x140] sm:$0xff]
    %v136 = vld [vmem:[#allocation3 + $0x148] sm:$0xff]
    %v137 = vld [vmem:[#allocation3 + $0x150] sm:$0xff]
    %v138 = vld [vmem:[#allocation3 + $0x158] sm:$0xff]
    %v139 = vld [vmem:[#allocation3 + $0x160] sm:$0xff]
    %v140 = vld [vmem:[#allocation3 + $0x168] sm:$0xff]
    %v141 = vld [vmem:[#allocation3 + $0x170] sm:$0xff]
    %v142 = vld [vmem:[#allocation3 + $0x178] sm:$0xff]
    %v143 = vld [vmem:[#allocation3 + $0x180] sm:$0xff]
    %v144 = vld [vmem:[#allocation3 + $0x188] sm:$0xff]
    %v145 = vld [vmem:[#allocation3 + $0x190] sm:$0xff]
    %v146 = vld [vmem:[#allocation3 + $0x198] sm:$0xff]
    %v147 = vld [vmem:[#allocation3 + $0x1a0] sm:$0xff]
    %v148 = vld [vmem:[#allocation3 + $0x1a8] sm:$0xff]
    %v149 = vld [vmem:[#allocation3 + $0x1b0] sm:$0xff]
    %v150 = vld [vmem:[#allocation3 + $0x1b8] sm:$0xff]
    %v151 = vld [vmem:[#allocation3 + $0x1c0] sm:$0xff]
    %v152 = vld [vmem:[#allocation3 + $0x1c8] sm:$0xff]
    %v153 = vld [vmem:[#allocation3 + $0x1d0] sm:$0xff]
    %v154 = vld [vmem:[#allocation3 + $0x1d8] sm:$0xff]
    %v155 = vld [vmem:[#allocation3 + $0x1e0] sm:$0xff]
    %v156 = vld [vmem:[#allocation3 + $0x1e8] sm:$0xff]
    %v157 = vld [vmem:[#allocation3 + $0x1f0] sm:$0xff]
    %v158 = vld [vmem:[#allocation3 + $0x1f8] sm:$0xff]
    %v159 = vld [vmem:[#allocation3 + $0x200] sm:$0xff]
    %v160 = vld [vmem:[#allocation3 + $0x208] sm:$0xff]
    %v161 = vld [vmem:[#allocation3 + $0x210] sm:$0xff]
    %v162 = vld [vmem:[#allocation3 + $0x218] sm:$0xff]
    %v163 = vld [vmem:[#allocation3 + $0x220] sm:$0xff]
    %v164 = vld [vmem:[#allocation3 + $0x228] sm:$0xff]
    %v165 = vld [vmem:[#allocation3 + $0x230] sm:$0xff]
    %v166 = vld [vmem:[#allocation3 + $0x238] sm:$0xff]
    %v167 = vld [vmem:[#allocation3 + $0x240] sm:$0xff]
    %v168 = vld [vmem:[#allocation3 + $0x248] sm:$0xff]
    %v169 = vld [vmem:[#allocation3 + $0x250] sm:$0xff]
    %v170 = vld [vmem:[#allocation3 + $0x258] sm:$0xff]
    %v171 = vld [vmem:[#allocation3 + $0x260] sm:$0xff]
    %v172 = vld [vmem:[#allocation3 + $0x268] sm:$0xff]
    %v173 = vld [vmem:[#allocation3 + $0x270] sm:$0xff]
    %v174 = vld [vmem:[#allocation3 + $0x278] sm:$0xff]
    %v175 = vld [vmem:[#allocation3 + $0x280] sm:$0xff]
    %v176 = vld [vmem:[#allocation3 + $0x288] sm:$0xff]
    %v177 = vld [vmem:[#allocation3 + $0x290] sm:$0xff]
    %v178 = vld [vmem:[#allocation3 + $0x298] sm:$0xff]
    %v179 = vld [vmem:[#allocation3 + $0x2a0] sm:$0xff]
    %v180 = vld [vmem:[#allocation3 + $0x2a8] sm:$0xff]
    %v181 = vld [vmem:[#allocation3 + $0x2b0] sm:$0xff]
    %v182 = vld [vmem:[#allocation3 + $0x2b8] sm:$0xff]
    %v183 = vld [vmem:[#allocation3 + $0x2c0] sm:$0xff]
    %v184 = vld [vmem:[#allocation3 + $0x2c8] sm:$0xff]
    %v185 = vld [vmem:[#allocation3 + $0x2d0] sm:$0xff]
    %v186 = vld [vmem:[#allocation3 + $0x2d8] sm:$0xff]
    %v187 = vld [vmem:[#allocation3 + $0x2e0] sm:$0xff]
    %v188 = vld [vmem:[#allocation3 + $0x2e8] sm:$0xff]
    %v189 = vld [vmem:[#allocation3 + $0x2f0] sm:$0xff]
    %v190 = vld [vmem:[#allocation3 + $0x2f8] sm:$0xff]
    %v191 = vld [vmem:[#allocation3 + $0x300] sm:$0xff]
    %v192 = vld [vmem:[#allocation3 + $0x308] sm:$0xff]
    %v193 = vld [vmem:[#allocation3 + $0x310] sm:$0xff]
    %v194 = vld [vmem:[#allocation3 + $0x318] sm:$0xff]
    %v195 = vld [vmem:[#allocation3 + $0x320] sm:$0xff]
    %v196 = vld [vmem:[#allocation3 + $0x328] sm:$0xff]
    %v197 = vld [vmem:[#allocation3 + $0x330] sm:$0xff]
    %v198 = vld [vmem:[#allocation3 + $0x338] sm:$0xff]
    %v199 = vld [vmem:[#allocation3 + $0x340] sm:$0xff]
    %v200 = vld [vmem:[#allocation3 + $0x348] sm:$0xff]
    %v201 = vld [vmem:[#allocation3 + $0x350] sm:$0xff]
    %v202 = vld [vmem:[#allocation3 + $0x358] sm:$0xff]
    %v203 = vld [vmem:[#allocation3 + $0x360] sm:$0xff]
    %v204 = vld [vmem:[#allocation3 + $0x368] sm:$0xff]
    %v205 = vld [vmem:[#allocation3 + $0x370] sm:$0xff]
    %v206 = vld [vmem:[#allocation3 + $0x378] sm:$0xff]
    %v207 = vld [vmem:[#allocation3 + $0x380] sm:$0xff]
    %v208 = vld [vmem:[#allocation3 + $0x388] sm:$0xff]
    %v209 = vld [vmem:[#allocation3 + $0x390] sm:$0xff]
    %v210 = vld [vmem:[#allocation3 + $0x398] sm:$0xff]
    %v211 = vld [vmem:[#allocation3 + $0x3a0] sm:$0xff]
    %v212 = vld [vmem:[#allocation3 + $0x3a8] sm:$0xff]
    %v213 = vld [vmem:[#allocation3 + $0x3b0] sm:$0xff]
    %v214 = vld [vmem:[#allocation3 + $0x3b8] sm:$0xff]
    %v215 = vld [vmem:[#allocation3 + $0x3c0] sm:$0xff]
    %v216 = vld [vmem:[#allocation3 + $0x3c8] sm:$0xff]
    %v217 = vld [vmem:[#allocation3 + $0x3d0] sm:$0xff]
    %v218 = vld [vmem:[#allocation3 + $0x3d8] sm:$0xff]
    %v219 = vld [vmem:[#allocation3 + $0x3e0] sm:$0xff]
    %v220 = vld [vmem:[#allocation3 + $0x3e8] sm:$0xff]
    %v221 = vld [vmem:[#allocation3 + $0x3f0] sm:$0xff]
    %v222 = vld [vmem:[#allocation3 + $0x3f8] sm:$0xff]
    %v223 = vpack.c.bf16 %v96, %v95
    %v224 = vpack.c.bf16 %v98, %v97
    %v225 = vpack.c.bf16 %v100, %v99
    %v226 = vpack.c.bf16 %v102, %v101
    %v227 = vpack.c.bf16 %v104, %v103
    %v228 = vpack.c.bf16 %v106, %v105
    %v229 = vpack.c.bf16 %v108, %v107
    %v230 = vpack.c.bf16 %v110, %v109
    %v231 = vpack.c.bf16 %v112, %v111
    %v232 = vpack.c.bf16 %v114, %v113
    %v233 = vpack.c.bf16 %v116, %v115
    %v234 = vpack.c.bf16 %v118, %v117
    %v235 = vpack.c.bf16 %v120, %v119
    %v236 = vpack.c.bf16 %v122, %v121
    %v237 = vpack.c.bf16 %v124, %v123
    %v238 = vpack.c.bf16 %v126, %v125
    %v239 = vpack.c.bf16 %v128, %v127
    %v240 = vpack.c.bf16 %v130, %v129
    %v241 = vpack.c.bf16 %v132, %v131
    %v242 = vpack.c.bf16 %v134, %v133
    %v243 = vpack.c.bf16 %v136, %v135
    %v244 = vpack.c.bf16 %v138, %v137
    %v245 = vpack.c.bf16 %v140, %v139
    %v246 = vpack.c.bf16 %v142, %v141
    %v247 = vpack.c.bf16 %v144, %v143
    %v248 = vpack.c.bf16 %v146, %v145
    %v249 = vpack.c.bf16 %v148, %v147
    %v250 = vpack.c.bf16 %v150, %v149
    %v251 = vpack.c.bf16 %v152, %v151
    %v252 = vpack.c.bf16 %v154, %v153
    %v253 = vpack.c.bf16 %v156, %v155
    %v254 = vpack.c.bf16 %v158, %v157
    %v255 = vpack.c.bf16 %v160, %v159
    %v256 = vpack.c.bf16 %v162, %v161
    %v257 = vpack.c.bf16 %v164, %v163
    %v258 = vpack.c.bf16 %v166, %v165
    %v259 = vpack.c.bf16 %v168, %v167
    %v260 = vpack.c.bf16 %v170, %v169
    %v261 = vpack.c.bf16 %v172, %v171
    %v262 = vpack.c.bf16 %v174, %v173
    %v263 = vpack.c.bf16 %v176, %v175
    %v264 = vpack.c.bf16 %v178, %v177
    %v265 = vpack.c.bf16 %v180, %v179
    %v266 = vpack.c.bf16 %v182, %v181
    %v267 = vpack.c.bf16 %v184, %v183
    %v268 = vpack.c.bf16 %v186, %v185
    %v269 = vpack.c.bf16 %v188, %v187
    %v270 = vpack.c.bf16 %v190, %v189
    %v271 = vpack.c.bf16 %v192, %v191
    %v272 = vpack.c.bf16 %v194, %v193
    %v273 = vpack.c.bf16 %v196, %v195
    %v274 = vpack.c.bf16 %v198, %v197
    %v275 = vpack.c.bf16 %v200, %v199
    %v276 = vpack.c.bf16 %v202, %v201
    %v277 = vpack.c.bf16 %v204, %v203
    %v278 = vpack.c.bf16 %v206, %v205
    %v279 = vpack.c.bf16 %v208, %v207
    %v280 = vpack.c.bf16 %v210, %v209
    %v281 = vpack.c.bf16 %v212, %v211
    %v282 = vpack.c.bf16 %v214, %v213
    %v283 = vpack.c.bf16 %v216, %v215
    %v284 = vpack.c.bf16 %v218, %v217
    %v285 = vpack.c.bf16 %v220, %v219
    %v286 = vpack.c.bf16 %v222, %v221
    %v288 = vlaneseq
    %v289 = vshrl.u32 %v288, 7
    %v290 = vsub.s32 0, %v289
    %v291 = vrot.slane %v75, %v290
    %v297 = vunpack.c.l.b16 %v71
    %v298 = vunpack.c.l.b16 %v72
    %v299 = vunpack.c.l.b16 %v73
    %v300 = vunpack.c.l.b16 %v74
    %v301 = vpack.c.b16 %v298, %v297
    %v302 = vpack.c.b16 %v300, %v299
    %vm305 = vcmask 261120
    %v307 = vsel %vm305, %v223, 0
    %v310 = vsel %vm305, %v224, 0
    %v313 = vsel %vm305, %v225, 0
    %v316 = vsel %vm305, %v226, 0
    %v319 = vsel %vm305, %v227, 0
    %v322 = vsel %vm305, %v228, 0
    %v325 = vsel %vm305, %v229, 0
    %v328 = vsel %vm305, %v230, 0
    %v331 = vsel %vm305, %v231, 0
    %v334 = vsel %vm305, %v232, 0
    %v337 = vsel %vm305, %v233, 0
    %v340 = vsel %vm305, %v234, 0
    %v343 = vsel %vm305, %v235, 0
    %v346 = vsel %vm305, %v236, 0
    %v349 = vsel %vm305, %v237, 0
    %v352 = vsel %vm305, %v238, 0
    %v355 = vsel %vm305, %v239, 0
    %v358 = vsel %vm305, %v240, 0
    %v361 = vsel %vm305, %v241, 0
    %v364 = vsel %vm305, %v242, 0
    %v367 = vsel %vm305, %v243, 0
    %v370 = vsel %vm305, %v244, 0
    %v373 = vsel %vm305, %v245, 0
    %v376 = vsel %vm305, %v246, 0
    %v379 = vsel %vm305, %v247, 0
    %v382 = vsel %vm305, %v248, 0
    %v385 = vsel %vm305, %v249, 0
    %v388 = vsel %vm305, %v250, 0
    %v391 = vsel %vm305, %v251, 0
    %v394 = vsel %vm305, %v252, 0
    %v397 = vsel %vm305, %v253, 0
    %v400 = vsel %vm305, %v254, 0
    %v403 = vsel %vm305, %v255, 0
    %v406 = vsel %vm305, %v256, 0
    %v409 = vsel %vm305, %v257, 0
    %v412 = vsel %vm305, %v258, 0
    %v415 = vsel %vm305, %v259, 0
    %v418 = vsel %vm305, %v260, 0
    %v421 = vsel %vm305, %v261, 0
    %v424 = vsel %vm305, %v262, 0
    %v427 = vsel %vm305, %v263, 0
    %v430 = vsel %vm305, %v264, 0
    %v433 = vsel %vm305, %v265, 0
    %v436 = vsel %vm305, %v266, 0
    %v439 = vsel %vm305, %v267, 0
    %v442 = vsel %vm305, %v268, 0
    %v445 = vsel %vm305, %v269, 0
    %v448 = vsel %vm305, %v270, 0
    %v451 = vsel %vm305, %v271, 0
    %v454 = vsel %vm305, %v272, 0
    %v457 = vsel %vm305, %v273, 0
    %v460 = vsel %vm305, %v274, 0
    %v463 = vsel %vm305, %v275, 0
    %v466 = vsel %vm305, %v276, 0
    %v469 = vsel %vm305, %v277, 0
    %v472 = vsel %vm305, %v278, 0
    %v475 = vsel %vm305, %v279, 0
    %v478 = vsel %vm305, %v280, 0
    %v481 = vsel %vm305, %v281, 0
    %v484 = vsel %vm305, %v282, 0
    %v487 = vsel %vm305, %v283, 0
    %v490 = vsel %vm305, %v284, 0
    %v493 = vsel %vm305, %v285, 0
    %v496 = vsel %vm305, %v286, 0
    %498 = vmatprep.subr.bf16.mxu0 0
    %499 = vmatpush1.bf16.msra.mxu0 %v301
    %500 = vmatprep.subr.bf16.mxu0 0
    %501 = vmatpush1.bf16.msra.mxu0 %v302
    %502 = vmatprep.subr.bf16.mxu0 0
    %503 = vmatpush1.bf16.msra.mxu0 0
    %504 = vmatprep.subr.bf16.mxu0 0
    %505 = vmatpush1.bf16.msra.mxu0 0
    %506 = vmatprep.subr.bf16.mxu0 0
    %507 = vmatpush1.bf16.msra.mxu0 0
    %508 = vmatprep.subr.bf16.mxu0 0
    %509 = vmatpush1.bf16.msra.mxu0 0
    %510 = vmatprep.subr.bf16.mxu0 0
    %511 = vmatpush1.bf16.msra.mxu0 0
    %512 = vmatprep.subr.bf16.mxu0 0
    %513 = vmatpush1.bf16.msra.mxu0 0
    %514 = vmatprep.subr.bf16.mxu0 0
    %515 = vmatpush1.bf16.msra.mxu0 0
    %516 = vmatprep.subr.bf16.mxu0 0
    %517 = vmatpush1.bf16.msra.mxu0 0
    %518 = vmatprep.subr.bf16.mxu0 0
    %519 = vmatpush1.bf16.msra.mxu0 0
    %520 = vmatprep.subr.bf16.mxu0 0
    %521 = vmatpush1.bf16.msra.mxu0 0
    %522 = vmatprep.subr.bf16.mxu0 0
    %523 = vmatpush1.bf16.msra.mxu0 0
    %524 = vmatprep.subr.bf16.mxu0 0
    %525 = vmatpush1.bf16.msra.mxu0 0
    %526 = vmatprep.subr.bf16.mxu0 0
    %527 = vmatpush1.bf16.msra.mxu0 0
    %528 = vmatprep.subr.bf16.mxu0 0
    %529 = vmatpush1.bf16.msra.mxu0 0
    %530 = vmatprep.mubr.bf16.mxu0 0
    %531 = vmatmul.mubr.bf16.gmra.mrb[0].mxu0 %v307
    %v532 = vpop.f32.mrb[0].mxu0
    %v533 = vadd.f32 %v291, %v532
    %v534 = vpop.f32.mrb[0].mxu0
    %v535 = vpop.f32.mrb[0].mxu0
    %v536 = vadd.f32 %v291, %v535
    %v537 = vpop.f32.mrb[0].mxu0
    %538 = vmatprep.mubr.bf16.mxu0 0
    %539 = vmatmul.mubr.bf16.gmra.mrb[0].mxu0 %v310
    %v540 = vpop.f32.mrb[0].mxu0
    %v541 = vadd.f32 %v291, %v540
    %v542 = vpop.f32.mrb[0].mxu0
    %v543 = vpop.f32.mrb[0].mxu0
    %v544 = vadd.f32 %v291, %v543
    %v545 = vpop.f32.mrb[0].mxu0
    %546 = vmatprep.mubr.bf16.mxu0 0
    %547 = vmatmul.mubr.bf16.gmra.mrb[0].mxu0 %v313
    %v548 = vpop.f32.mrb[0].mxu0
    %v549 = vadd.f32 %v291, %v548
    %v550 = vpop.f32.mrb[0].mxu0
    %v551 = vpop.f32.mrb[0].mxu0
    %v552 = vadd.f32 %v291, %v551
    %v553 = vpop.f32.mrb[0].mxu0
    %554 = vmatprep.mubr.bf16.mxu0 0
    %555 = vmatmul.mubr.bf16.gmra.mrb[0].mxu0 %v316
    %v556 = vpop.f32.mrb[0].mxu0
    %v557 = vadd.f32 %v291, %v556
    %v558 = vpop.f32.mrb[0].mxu0
    %v559 = vpop.f32.mrb[0].mxu0
    %v560 = vadd.f32 %v291, %v559
    %v561 = vpop.f32.mrb[0].mxu0
    %562 = vmatprep.mubr.bf16.mxu0 0
    %563 = vmatmul.mubr.bf16.gmra.mrb[0].mxu0 %v319
    %v564 = vpop.f32.mrb[0].mxu0
    %v565 = vadd.f32 %v291, %v564
    %v566 = vpop.f32.mrb[0].mxu0
    %v567 = vpop.f32.mrb[0].mxu0
    %v568 = vadd.f32 %v291, %v567
    %v569 = vpop.f32.mrb[0].mxu0
    %570 = vmatprep.mubr.bf16.mxu0 0
    %571 = vmatmul.mubr.bf16.gmra.mrb[0].mxu0 %v322
    %v572 = vpop.f32.mrb[0].mxu0
    %v573 = vadd.f32 %v291, %v572
    %v574 = vpop.f32.mrb[0].mxu0
    %v575 = vpop.f32.mrb[0].mxu0
    %v576 = vadd.f32 %v291, %v575
    %v577 = vpop.f32.mrb[0].mxu0
    %578 = vmatprep.mubr.bf16.mxu0 0
    %579 = vmatmul.mubr.bf16.gmra.mrb[0].mxu0 %v325
    %v580 = vpop.f32.mrb[0].mxu0
    %v581 = vadd.f32 %v291, %v580
    %v582 = vpop.f32.mrb[0].mxu0
    %v583 = vpop.f32.mrb[0].mxu0
    %v584 = vadd.f32 %v291, %v583
    %v585 = vpop.f32.mrb[0].mxu0
    %586 = vmatprep.mubr.bf16.mxu0 0
    %587 = vmatmul.mubr.bf16.gmra.mrb[0].mxu0 %v328
    %v588 = vpop.f32.mrb[0].mxu0
    %v589 = vadd.f32 %v291, %v588
    %v590 = vpop.f32.mrb[0].mxu0
    %v591 = vpop.f32.mrb[0].mxu0
    %v592 = vadd.f32 %v291, %v591
    %v593 = vpop.f32.mrb[0].mxu0
    %594 = vmatprep.mubr.bf16.mxu0 0
    %595 = vmatmul.mubr.bf16.gmra.mrb[0].mxu0 %v331
    %v596 = vpop.f32.mrb[0].mxu0
    %v597 = vadd.f32 %v291, %v596
    %v598 = vpop.f32.mrb[0].mxu0
    %v599 = vpop.f32.mrb[0].mxu0
    %v600 = vadd.f32 %v291, %v599
    %v601 = vpop.f32.mrb[0].mxu0
    %602 = vmatprep.mubr.bf16.mxu0 0
    %603 = vmatmul.mubr.bf16.gmra.mrb[0].mxu0 %v334
    %v604 = vpop.f32.mrb[0].mxu0
    %v605 = vadd.f32 %v291, %v604
    %v606 = vpop.f32.mrb[0].mxu0
    %v607 = vpop.f32.mrb[0].mxu0
    %v608 = vadd.f32 %v291, %v607
    %v609 = vpop.f32.mrb[0].mxu0
    %610 = vmatprep.mubr.bf16.mxu0 0
    %611 = vmatmul.mubr.bf16.gmra.mrb[0].mxu0 %v337
    %v612 = vpop.f32.mrb[0].mxu0
    %v613 = vadd.f32 %v291, %v612
    %v614 = vpop.f32.mrb[0].mxu0
    %v615 = vpop.f32.mrb[0].mxu0
    %v616 = vadd.f32 %v291, %v615
    %v617 = vpop.f32.mrb[0].mxu0
    %618 = vmatprep.mubr.bf16.mxu0 0
    %619 = vmatmul.mubr.bf16.gmra.mrb[0].mxu0 %v340
    %v620 = vpop.f32.mrb[0].mxu0
    %v621 = vadd.f32 %v291, %v620
    %v622 = vpop.f32.mrb[0].mxu0
    %v623 = vpop.f32.mrb[0].mxu0
    %v624 = vadd.f32 %v291, %v623
    %v625 = vpop.f32.mrb[0].mxu0
    %626 = vmatprep.mubr.bf16.mxu0 0
    %627 = vmatmul.mubr.bf16.gmra.mrb[0].mxu0 %v343
    %v628 = vpop.f32.mrb[0].mxu0
    %v629 = vadd.f32 %v291, %v628
    %v630 = vpop.f32.mrb[0].mxu0
    %v631 = vpop.f32.mrb[0].mxu0
    %v632 = vadd.f32 %v291, %v631
    %v633 = vpop.f32.mrb[0].mxu0
    %634 = vmatprep.mubr.bf16.mxu0 0
    %635 = vmatmul.mubr.bf16.gmra.mrb[0].mxu0 %v346
    %v636 = vpop.f32.mrb[0].mxu0
    %v637 = vadd.f32 %v291, %v636
    %v638 = vpop.f32.mrb[0].mxu0
    %v639 = vpop.f32.mrb[0].mxu0
    %v640 = vadd.f32 %v291, %v639
    %v641 = vpop.f32.mrb[0].mxu0
    %642 = vmatprep.mubr.bf16.mxu0 0
    %643 = vmatmul.mubr.bf16.gmra.mrb[0].mxu0 %v349
    %v644 = vpop.f32.mrb[0].mxu0
    %v645 = vadd.f32 %v291, %v644
    %v646 = vpop.f32.mrb[0].mxu0
    %v647 = vpop.f32.mrb[0].mxu0
    %v648 = vadd.f32 %v291, %v647
    %v649 = vpop.f32.mrb[0].mxu0
    %650 = vmatprep.mubr.bf16.mxu0 0
    %651 = vmatmul.mubr.bf16.gmra.mrb[0].mxu0 %v352
    %v652 = vpop.f32.mrb[0].mxu0
    %v653 = vadd.f32 %v291, %v652
    %v654 = vpop.f32.mrb[0].mxu0
    %v655 = vpop.f32.mrb[0].mxu0
    %v656 = vadd.f32 %v291, %v655
    %v657 = vpop.f32.mrb[0].mxu0
    %658 = vmatprep.mubr.bf16.mxu0 0
    %659 = vmatmul.mubr.bf16.gmra.mrb[0].mxu0 %v355
    %v660 = vpop.f32.mrb[0].mxu0
    %v661 = vadd.f32 %v291, %v660
    %v662 = vpop.f32.mrb[0].mxu0
    %v663 = vpop.f32.mrb[0].mxu0
    %v664 = vadd.f32 %v291, %v663
    %v665 = vpop.f32.mrb[0].mxu0
    %666 = vmatprep.mubr.bf16.mxu0 0
    %667 = vmatmul.mubr.bf16.gmra.mrb[0].mxu0 %v358
    %v668 = vpop.f32.mrb[0].mxu0
    %v669 = vadd.f32 %v291, %v668
    %v670 = vpop.f32.mrb[0].mxu0
    %v671 = vpop.f32.mrb[0].mxu0
    %v672 = vadd.f32 %v291, %v671
    %v673 = vpop.f32.mrb[0].mxu0
    %674 = vmatprep.mubr.bf16.mxu0 0
    %675 = vmatmul.mubr.bf16.gmra.mrb[0].mxu0 %v361
    %v676 = vpop.f32.mrb[0].mxu0
    %v677 = vadd.f32 %v291, %v676
    %v678 = vpop.f32.mrb[0].mxu0
    %v679 = vpop.f32.mrb[0].mxu0
    %v680 = vadd.f32 %v291, %v679
    %v681 = vpop.f32.mrb[0].mxu0
    %682 = vmatprep.mubr.bf16.mxu0 0
    %683 = vmatmul.mubr.bf16.gmra.mrb[0].mxu0 %v364
    %v684 = vpop.f32.mrb[0].mxu0
    %v685 = vadd.f32 %v291, %v684
    %v686 = vpop.f32.mrb[0].mxu0
    %v687 = vpop.f32.mrb[0].mxu0
    %v688 = vadd.f32 %v291, %v687
    %v689 = vpop.f32.mrb[0].mxu0
    %690 = vmatprep.mubr.bf16.mxu0 0
    %691 = vmatmul.mubr.bf16.gmra.mrb[0].mxu0 %v367
    %v692 = vpop.f32.mrb[0].mxu0
    %v693 = vadd.f32 %v291, %v692
    %v694 = vpop.f32.mrb[0].mxu0
    %v695 = vpop.f32.mrb[0].mxu0
    %v696 = vadd.f32 %v291, %v695
    %v697 = vpop.f32.mrb[0].mxu0
    %698 = vmatprep.mubr.bf16.mxu0 0
    %699 = vmatmul.mubr.bf16.gmra.mrb[0].mxu0 %v370
    %v700 = vpop.f32.mrb[0].mxu0
    %v701 = vadd.f32 %v291, %v700
    %v702 = vpop.f32.mrb[0].mxu0
    %v703 = vpop.f32.mrb[0].mxu0
    %v704 = vadd.f32 %v291, %v703
    %v705 = vpop.f32.mrb[0].mxu0
    %706 = vmatprep.mubr.bf16.mxu0 0
    %707 = vmatmul.mubr.bf16.gmra.mrb[0].mxu0 %v373
    %v708 = vpop.f32.mrb[0].mxu0
    %v709 = vadd.f32 %v291, %v708
    %v710 = vpop.f32.mrb[0].mxu0
    %v711 = vpop.f32.mrb[0].mxu0
    %v712 = vadd.f32 %v291, %v711
    %v713 = vpop.f32.mrb[0].mxu0
    %714 = vmatprep.mubr.bf16.mxu0 0
    %715 = vmatmul.mubr.bf16.gmra.mrb[0].mxu0 %v376
    %v716 = vpop.f32.mrb[0].mxu0
    %v717 = vadd.f32 %v291, %v716
    %v718 = vpop.f32.mrb[0].mxu0
    %v719 = vpop.f32.mrb[0].mxu0
    %v720 = vadd.f32 %v291, %v719
    %v721 = vpop.f32.mrb[0].mxu0
    %722 = vmatprep.mubr.bf16.mxu0 0
    %723 = vmatmul.mubr.bf16.gmra.mrb[0].mxu0 %v379
    %v724 = vpop.f32.mrb[0].mxu0
    %v725 = vadd.f32 %v291, %v724
    %v726 = vpop.f32.mrb[0].mxu0
    %v727 = vpop.f32.mrb[0].mxu0
    %v728 = vadd.f32 %v291, %v727
    %v729 = vpop.f32.mrb[0].mxu0
    %730 = vmatprep.mubr.bf16.mxu0 0
    %731 = vmatmul.mubr.bf16.gmra.mrb[0].mxu0 %v382
    %v732 = vpop.f32.mrb[0].mxu0
    %v733 = vadd.f32 %v291, %v732
    %v734 = vpop.f32.mrb[0].mxu0
    %v735 = vpop.f32.mrb[0].mxu0
    %v736 = vadd.f32 %v291, %v735
    %v737 = vpop.f32.mrb[0].mxu0
    %738 = vmatprep.mubr.bf16.mxu0 0
    %739 = vmatmul.mubr.bf16.gmra.mrb[0].mxu0 %v385
    %v740 = vpop.f32.mrb[0].mxu0
    %v741 = vadd.f32 %v291, %v740
    %v742 = vpop.f32.mrb[0].mxu0
    %v743 = vpop.f32.mrb[0].mxu0
    %v744 = vadd.f32 %v291, %v743
    %v745 = vpop.f32.mrb[0].mxu0
    %746 = vmatprep.mubr.bf16.mxu0 0
    %747 = vmatmul.mubr.bf16.gmra.mrb[0].mxu0 %v388
    %v748 = vpop.f32.mrb[0].mxu0
    %v749 = vadd.f32 %v291, %v748
    %v750 = vpop.f32.mrb[0].mxu0
    %v751 = vpop.f32.mrb[0].mxu0
    %v752 = vadd.f32 %v291, %v751
    %v753 = vpop.f32.mrb[0].mxu0
    %754 = vmatprep.mubr.bf16.mxu0 0
    %755 = vmatmul.mubr.bf16.gmra.mrb[0].mxu0 %v391
    %v756 = vpop.f32.mrb[0].mxu0
    %v757 = vadd.f32 %v291, %v756
    %v758 = vpop.f32.mrb[0].mxu0
    %v759 = vpop.f32.mrb[0].mxu0
    %v760 = vadd.f32 %v291, %v759
    %v761 = vpop.f32.mrb[0].mxu0
    %762 = vmatprep.mubr.bf16.mxu0 0
    %763 = vmatmul.mubr.bf16.gmra.mrb[0].mxu0 %v394
    %v764 = vpop.f32.mrb[0].mxu0
    %v765 = vadd.f32 %v291, %v764
    %v766 = vpop.f32.mrb[0].mxu0
    %v767 = vpop.f32.mrb[0].mxu0
    %v768 = vadd.f32 %v291, %v767
    %v769 = vpop.f32.mrb[0].mxu0
    %770 = vmatprep.mubr.bf16.mxu0 0
    %771 = vmatmul.mubr.bf16.gmra.mrb[0].mxu0 %v397
    %v772 = vpop.f32.mrb[0].mxu0
    %v773 = vadd.f32 %v291, %v772
    %v774 = vpop.f32.mrb[0].mxu0
    %v775 = vpop.f32.mrb[0].mxu0
    %v776 = vadd.f32 %v291, %v775
    %v777 = vpop.f32.mrb[0].mxu0
    %778 = vmatprep.mubr.bf16.mxu0 0
    %779 = vmatmul.mubr.bf16.gmra.mrb[0].mxu0 %v400
    %v780 = vpop.f32.mrb[0].mxu0
    %v781 = vadd.f32 %v291, %v780
    %v782 = vpop.f32.mrb[0].mxu0
    %v783 = vpop.f32.mrb[0].mxu0
    %v784 = vadd.f32 %v291, %v783
    %v785 = vpop.f32.mrb[0].mxu0
    %786 = vmatprep.mubr.bf16.mxu0 0
    %787 = vmatmul.mubr.bf16.gmra.mrb[0].mxu0 %v403
    %v788 = vpop.f32.mrb[0].mxu0
    %v789 = vadd.f32 %v291, %v788
    %v790 = vpop.f32.mrb[0].mxu0
    %v791 = vpop.f32.mrb[0].mxu0
    %v792 = vadd.f32 %v291, %v791
    %v793 = vpop.f32.mrb[0].mxu0
    %794 = vmatprep.mubr.bf16.mxu0 0
    %795 = vmatmul.mubr.bf16.gmra.mrb[0].mxu0 %v406
    %v796 = vpop.f32.mrb[0].mxu0
    %v797 = vadd.f32 %v291, %v796
    %v798 = vpop.f32.mrb[0].mxu0
    %v799 = vpop.f32.mrb[0].mxu0
    %v800 = vadd.f32 %v291, %v799
    %v801 = vpop.f32.mrb[0].mxu0
    %802 = vmatprep.mubr.bf16.mxu0 0
    %803 = vmatmul.mubr.bf16.gmra.mrb[0].mxu0 %v409
    %v804 = vpop.f32.mrb[0].mxu0
    %v805 = vadd.f32 %v291, %v804
    %v806 = vpop.f32.mrb[0].mxu0
    %v807 = vpop.f32.mrb[0].mxu0
    %v808 = vadd.f32 %v291, %v807
    %v809 = vpop.f32.mrb[0].mxu0
    %810 = vmatprep.mubr.bf16.mxu0 0
    %811 = vmatmul.mubr.bf16.gmra.mrb[0].mxu0 %v412
    %v812 = vpop.f32.mrb[0].mxu0
    %v813 = vadd.f32 %v291, %v812
    %v814 = vpop.f32.mrb[0].mxu0
    %v815 = vpop.f32.mrb[0].mxu0
    %v816 = vadd.f32 %v291, %v815
    %v817 = vpop.f32.mrb[0].mxu0
    %818 = vmatprep.mubr.bf16.mxu0 0
    %819 = vmatmul.mubr.bf16.gmra.mrb[0].mxu0 %v415
    %v820 = vpop.f32.mrb[0].mxu0
    %v821 = vadd.f32 %v291, %v820
    %v822 = vpop.f32.mrb[0].mxu0
    %v823 = vpop.f32.mrb[0].mxu0
    %v824 = vadd.f32 %v291, %v823
    %v825 = vpop.f32.mrb[0].mxu0
    %826 = vmatprep.mubr.bf16.mxu0 0
    %827 = vmatmul.mubr.bf16.gmra.mrb[0].mxu0 %v418
    %v828 = vpop.f32.mrb[0].mxu0
    %v829 = vadd.f32 %v291, %v828
    %v830 = vpop.f32.mrb[0].mxu0
    %v831 = vpop.f32.mrb[0].mxu0
    %v832 = vadd.f32 %v291, %v831
    %v833 = vpop.f32.mrb[0].mxu0
    %834 = vmatprep.mubr.bf16.mxu0 0
    %835 = vmatmul.mubr.bf16.gmra.mrb[0].mxu0 %v421
    %v836 = vpop.f32.mrb[0].mxu0
    %v837 = vadd.f32 %v291, %v836
    %v838 = vpop.f32.mrb[0].mxu0
    %v839 = vpop.f32.mrb[0].mxu0
    %v840 = vadd.f32 %v291, %v839
    %v841 = vpop.f32.mrb[0].mxu0
    %842 = vmatprep.mubr.bf16.mxu0 0
    %843 = vmatmul.mubr.bf16.gmra.mrb[0].mxu0 %v424
    %v844 = vpop.f32.mrb[0].mxu0
    %v845 = vadd.f32 %v291, %v844
    %v846 = vpop.f32.mrb[0].mxu0
    %v847 = vpop.f32.mrb[0].mxu0
    %v848 = vadd.f32 %v291, %v847
    %v849 = vpop.f32.mrb[0].mxu0
    %850 = vmatprep.mubr.bf16.mxu0 0
    %851 = vmatmul.mubr.bf16.gmra.mrb[0].mxu0 %v427
    %v852 = vpop.f32.mrb[0].mxu0
    %v853 = vadd.f32 %v291, %v852
    %v854 = vpop.f32.mrb[0].mxu0
    %v855 = vpop.f32.mrb[0].mxu0
    %v856 = vadd.f32 %v291, %v855
    %v857 = vpop.f32.mrb[0].mxu0
    %858 = vmatprep.mubr.bf16.mxu0 0
    %859 = vmatmul.mubr.bf16.gmra.mrb[0].mxu0 %v430
    %v860 = vpop.f32.mrb[0].mxu0
    %v861 = vadd.f32 %v291, %v860
    %v862 = vpop.f32.mrb[0].mxu0
    %v863 = vpop.f32.mrb[0].mxu0
    %v864 = vadd.f32 %v291, %v863
    %v865 = vpop.f32.mrb[0].mxu0
    %866 = vmatprep.mubr.bf16.mxu0 0
    %867 = vmatmul.mubr.bf16.gmra.mrb[0].mxu0 %v433
    %v868 = vpop.f32.mrb[0].mxu0
    %v869 = vadd.f32 %v291, %v868
    %v870 = vpop.f32.mrb[0].mxu0
    %v871 = vpop.f32.mrb[0].mxu0
    %v872 = vadd.f32 %v291, %v871
    %v873 = vpop.f32.mrb[0].mxu0
    %874 = vmatprep.mubr.bf16.mxu0 0
    %875 = vmatmul.mubr.bf16.gmra.mrb[0].mxu0 %v436
    %v876 = vpop.f32.mrb[0].mxu0
    %v877 = vadd.f32 %v291, %v876
    %v878 = vpop.f32.mrb[0].mxu0
    %v879 = vpop.f32.mrb[0].mxu0
    %v880 = vadd.f32 %v291, %v879
    %v881 = vpop.f32.mrb[0].mxu0
    %882 = vmatprep.mubr.bf16.mxu0 0
    %883 = vmatmul.mubr.bf16.gmra.mrb[0].mxu0 %v439
    %v884 = vpop.f32.mrb[0].mxu0
    %v885 = vadd.f32 %v291, %v884
    %v886 = vpop.f32.mrb[0].mxu0
    %v887 = vpop.f32.mrb[0].mxu0
    %v888 = vadd.f32 %v291, %v887
    %v889 = vpop.f32.mrb[0].mxu0
    %890 = vmatprep.mubr.bf16.mxu0 0
    %891 = vmatmul.mubr.bf16.gmra.mrb[0].mxu0 %v442
    %v892 = vpop.f32.mrb[0].mxu0
    %v893 = vadd.f32 %v291, %v892
    %v894 = vpop.f32.mrb[0].mxu0
    %v895 = vpop.f32.mrb[0].mxu0
    %v896 = vadd.f32 %v291, %v895
    %v897 = vpop.f32.mrb[0].mxu0
    %898 = vmatprep.mubr.bf16.mxu0 0
    %899 = vmatmul.mubr.bf16.gmra.mrb[0].mxu0 %v445
    %v900 = vpop.f32.mrb[0].mxu0
    %v901 = vadd.f32 %v291, %v900
    %v902 = vpop.f32.mrb[0].mxu0
    %v903 = vpop.f32.mrb[0].mxu0
    %v904 = vadd.f32 %v291, %v903
    %v905 = vpop.f32.mrb[0].mxu0
    %906 = vmatprep.mubr.bf16.mxu0 0
    %907 = vmatmul.mubr.bf16.gmra.mrb[0].mxu0 %v448
    %v908 = vpop.f32.mrb[0].mxu0
    %v909 = vadd.f32 %v291, %v908
    %v910 = vpop.f32.mrb[0].mxu0
    %v911 = vpop.f32.mrb[0].mxu0
    %v912 = vadd.f32 %v291, %v911
    %v913 = vpop.f32.mrb[0].mxu0
    %914 = vmatprep.mubr.bf16.mxu0 0
    %915 = vmatmul.mubr.bf16.gmra.mrb[0].mxu0 %v451
    %v916 = vpop.f32.mrb[0].mxu0
    %v917 = vadd.f32 %v291, %v916
    %v918 = vpop.f32.mrb[0].mxu0
    %v919 = vpop.f32.mrb[0].mxu0
    %v920 = vadd.f32 %v291, %v919
    %v921 = vpop.f32.mrb[0].mxu0
    %922 = vmatprep.mubr.bf16.mxu0 0
    %923 = vmatmul.mubr.bf16.gmra.mrb[0].mxu0 %v454
    %v924 = vpop.f32.mrb[0].mxu0
    %v925 = vadd.f32 %v291, %v924
    %v926 = vpop.f32.mrb[0].mxu0
    %v927 = vpop.f32.mrb[0].mxu0
    %v928 = vadd.f32 %v291, %v927
    %v929 = vpop.f32.mrb[0].mxu0
    %930 = vmatprep.mubr.bf16.mxu0 0
    %931 = vmatmul.mubr.bf16.gmra.mrb[0].mxu0 %v457
    %v932 = vpop.f32.mrb[0].mxu0
    %v933 = vadd.f32 %v291, %v932
    %v934 = vpop.f32.mrb[0].mxu0
    %v935 = vpop.f32.mrb[0].mxu0
    %v936 = vadd.f32 %v291, %v935
    %v937 = vpop.f32.mrb[0].mxu0
    %938 = vmatprep.mubr.bf16.mxu0 0
    %939 = vmatmul.mubr.bf16.gmra.mrb[0].mxu0 %v460
    %v940 = vpop.f32.mrb[0].mxu0
    %v941 = vadd.f32 %v291, %v940
    %v942 = vpop.f32.mrb[0].mxu0
    %v943 = vpop.f32.mrb[0].mxu0
    %v944 = vadd.f32 %v291, %v943
    %v945 = vpop.f32.mrb[0].mxu0
    %946 = vmatprep.mubr.bf16.mxu0 0
    %947 = vmatmul.mubr.bf16.gmra.mrb[0].mxu0 %v463
    %v948 = vpop.f32.mrb[0].mxu0
    %v949 = vadd.f32 %v291, %v948
    %v950 = vpop.f32.mrb[0].mxu0
    %v951 = vpop.f32.mrb[0].mxu0
    %v952 = vadd.f32 %v291, %v951
    %v953 = vpop.f32.mrb[0].mxu0
    %954 = vmatprep.mubr.bf16.mxu0 0
    %955 = vmatmul.mubr.bf16.gmra.mrb[0].mxu0 %v466
    %v956 = vpop.f32.mrb[0].mxu0
    %v957 = vadd.f32 %v291, %v956
    %v958 = vpop.f32.mrb[0].mxu0
    %v959 = vpop.f32.mrb[0].mxu0
    %v960 = vadd.f32 %v291, %v959
    %v961 = vpop.f32.mrb[0].mxu0
    %962 = vmatprep.mubr.bf16.mxu0 0
    %963 = vmatmul.mubr.bf16.gmra.mrb[0].mxu0 %v469
    %v964 = vpop.f32.mrb[0].mxu0
    %v965 = vadd.f32 %v291, %v964
    %v966 = vpop.f32.mrb[0].mxu0
    %v967 = vpop.f32.mrb[0].mxu0
    %v968 = vadd.f32 %v291, %v967
    %v969 = vpop.f32.mrb[0].mxu0
    %970 = vmatprep.mubr.bf16.mxu0 0
    %971 = vmatmul.mubr.bf16.gmra.mrb[0].mxu0 %v472
    %v972 = vpop.f32.mrb[0].mxu0
    %v973 = vadd.f32 %v291, %v972
    %v974 = vpop.f32.mrb[0].mxu0
    %v975 = vpop.f32.mrb[0].mxu0
    %v976 = vadd.f32 %v291, %v975
    %v977 = vpop.f32.mrb[0].mxu0
    %978 = vmatprep.mubr.bf16.mxu0 0
    %979 = vmatmul.mubr.bf16.gmra.mrb[0].mxu0 %v475
    %v980 = vpop.f32.mrb[0].mxu0
    %v981 = vadd.f32 %v291, %v980
    %v982 = vpop.f32.mrb[0].mxu0
    %v983 = vpop.f32.mrb[0].mxu0
    %v984 = vadd.f32 %v291, %v983
    %v985 = vpop.f32.mrb[0].mxu0
    %986 = vmatprep.mubr.bf16.mxu0 0
    %987 = vmatmul.mubr.bf16.gmra.mrb[0].mxu0 %v478
    %v988 = vpop.f32.mrb[0].mxu0
    %v989 = vadd.f32 %v291, %v988
    %v990 = vpop.f32.mrb[0].mxu0
    %v991 = vpop.f32.mrb[0].mxu0
    %v992 = vadd.f32 %v291, %v991
    %v993 = vpop.f32.mrb[0].mxu0
    %994 = vmatprep.mubr.bf16.mxu0 0
    %995 = vmatmul.mubr.bf16.gmra.mrb[0].mxu0 %v481
    %v996 = vpop.f32.mrb[0].mxu0
    %v997 = vadd.f32 %v291, %v996
    %v998 = vpop.f32.mrb[0].mxu0
    %v999 = vpop.f32.mrb[0].mxu0
    %v1000 = vadd.f32 %v291, %v999
    %v1001 = vpop.f32.mrb[0].mxu0
    %1002 = vmatprep.mubr.bf16.mxu0 0
    %1003 = vmatmul.mubr.bf16.gmra.mrb[0].mxu0 %v484
    %v1004 = vpop.f32.mrb[0].mxu0
    %v1005 = vadd.f32 %v291, %v1004
    %v1006 = vpop.f32.mrb[0].mxu0
    %v1007 = vpop.f32.mrb[0].mxu0
    %v1008 = vadd.f32 %v291, %v1007
    %v1009 = vpop.f32.mrb[0].mxu0
    %1010 = vmatprep.mubr.bf16.mxu0 0
    %1011 = vmatmul.mubr.bf16.gmra.mrb[0].mxu0 %v487
    %v1012 = vpop.f32.mrb[0].mxu0
    %v1013 = vadd.f32 %v291, %v1012
    %v1014 = vpop.f32.mrb[0].mxu0
    %v1015 = vpop.f32.mrb[0].mxu0
    %v1016 = vadd.f32 %v291, %v1015
    %v1017 = vpop.f32.mrb[0].mxu0
    %1018 = vmatprep.mubr.bf16.mxu0 0
    %1019 = vmatmul.mubr.bf16.gmra.mrb[0].mxu0 %v490
    %v1020 = vpop.f32.mrb[0].mxu0
    %v1021 = vadd.f32 %v291, %v1020
    %v1022 = vpop.f32.mrb[0].mxu0
    %v1023 = vpop.f32.mrb[0].mxu0
    %v1024 = vadd.f32 %v291, %v1023
    %v1025 = vpop.f32.mrb[0].mxu0
    %1026 = vmatprep.mubr.bf16.mxu0 0
    %1027 = vmatmul.mubr.bf16.gmra.mrb[0].mxu0 %v493
    %v1028 = vpop.f32.mrb[0].mxu0
    %v1029 = vadd.f32 %v291, %v1028
    %v1030 = vpop.f32.mrb[0].mxu0
    %v1031 = vpop.f32.mrb[0].mxu0
    %v1032 = vadd.f32 %v291, %v1031
    %v1033 = vpop.f32.mrb[0].mxu0
    %1034 = vmatprep.mubr.bf16.mxu0 0
    %1035 = vmatmul.mubr.bf16.gmra.mrb[0].mxu0 %v496
    %v1036 = vpop.f32.mrb[0].mxu0
    %v1037 = vadd.f32 %v291, %v1036
    %v1038 = vpop.f32.mrb[0].mxu0
    %v1039 = vpop.f32.mrb[0].mxu0
    %v1040 = vadd.f32 %v291, %v1039
    %v1041 = vpop.f32.mrb[0].mxu0
    %1042 = vdwg.mxu0
    %v1043 = vmax.f32 %v533, 0.0
    %v1044 = vmax.f32 %v536, 0.0
    %v1045 = vmax.f32 %v541, 0.0
    %v1046 = vmax.f32 %v544, 0.0
    %v1047 = vmax.f32 %v549, 0.0
    %v1048 = vmax.f32 %v552, 0.0
    %v1049 = vmax.f32 %v557, 0.0
    %v1050 = vmax.f32 %v560, 0.0
    %v1051 = vmax.f32 %v565, 0.0
    %v1052 = vmax.f32 %v568, 0.0
    %v1053 = vmax.f32 %v573, 0.0
    %v1054 = vmax.f32 %v576, 0.0
    %v1055 = vmax.f32 %v581, 0.0
    %v1056 = vmax.f32 %v584, 0.0
    %v1057 = vmax.f32 %v589, 0.0
    %v1058 = vmax.f32 %v592, 0.0
    %v1059 = vmax.f32 %v597, 0.0
    %v1060 = vmax.f32 %v600, 0.0
    %v1061 = vmax.f32 %v605, 0.0
    %v1062 = vmax.f32 %v608, 0.0
    %v1063 = vmax.f32 %v613, 0.0
    %v1064 = vmax.f32 %v616, 0.0
    %v1065 = vmax.f32 %v621, 0.0
    %v1066 = vmax.f32 %v624, 0.0
    %v1067 = vmax.f32 %v629, 0.0
    %v1068 = vmax.f32 %v632, 0.0
    %v1069 = vmax.f32 %v637, 0.0
    %v1070 = vmax.f32 %v640, 0.0
    %v1071 = vmax.f32 %v645, 0.0
    %v1072 = vmax.f32 %v648, 0.0
    %v1073 = vmax.f32 %v653, 0.0
    %v1074 = vmax.f32 %v656, 0.0
    %v1075 = vmax.f32 %v661, 0.0
    %v1076 = vmax.f32 %v664, 0.0
    %v1077 = vmax.f32 %v669, 0.0
    %v1078 = vmax.f32 %v672, 0.0
    %v1079 = vmax.f32 %v677, 0.0
    %v1080 = vmax.f32 %v680, 0.0
    %v1081 = vmax.f32 %v685, 0.0
    %v1082 = vmax.f32 %v688, 0.0
    %v1083 = vmax.f32 %v693, 0.0
    %v1084 = vmax.f32 %v696, 0.0
    %v1085 = vmax.f32 %v701, 0.0
    %v1086 = vmax.f32 %v704, 0.0
    %v1087 = vmax.f32 %v709, 0.0
    %v1088 = vmax.f32 %v712, 0.0
    %v1089 = vmax.f32 %v717, 0.0
    %v1090 = vmax.f32 %v720, 0.0
    %v1091 = vmax.f32 %v725, 0.0
    %v1092 = vmax.f32 %v728, 0.0
    %v1093 = vmax.f32 %v733, 0.0
    %v1094 = vmax.f32 %v736, 0.0
    %v1095 = vmax.f32 %v741, 0.0
    %v1096 = vmax.f32 %v744, 0.0
    %v1097 = vmax.f32 %v749, 0.0
    %v1098 = vmax.f32 %v752, 0.0
    %v1099 = vmax.f32 %v757, 0.0
    %v1100 = vmax.f32 %v760, 0.0
    %v1101 = vmax.f32 %v765, 0.0
    %v1102 = vmax.f32 %v768, 0.0
    %v1103 = vmax.f32 %v773, 0.0
    %v1104 = vmax.f32 %v776, 0.0
    %v1105 = vmax.f32 %v781, 0.0
    %v1106 = vmax.f32 %v784, 0.0
    %v1107 = vmax.f32 %v789, 0.0
    %v1108 = vmax.f32 %v792, 0.0
    %v1109 = vmax.f32 %v797, 0.0
    %v1110 = vmax.f32 %v800, 0.0
    %v1111 = vmax.f32 %v805, 0.0
    %v1112 = vmax.f32 %v808, 0.0
    %v1113 = vmax.f32 %v813, 0.0
    %v1114 = vmax.f32 %v816, 0.0
    %v1115 = vmax.f32 %v821, 0.0
    %v1116 = vmax.f32 %v824, 0.0
    %v1117 = vmax.f32 %v829, 0.0
    %v1118 = vmax.f32 %v832, 0.0
    %v1119 = vmax.f32 %v837, 0.0
    %v1120 = vmax.f32 %v840, 0.0
    %v1121 = vmax.f32 %v845, 0.0
    %v1122 = vmax.f32 %v848, 0.0
    %v1123 = vmax.f32 %v853, 0.0
    %v1124 = vmax.f32 %v856, 0.0
    %v1125 = vmax.f32 %v861, 0.0
    %v1126 = vmax.f32 %v864, 0.0
    %v1127 = vmax.f32 %v869, 0.0
    %v1128 = vmax.f32 %v872, 0.0
    %v1129 = vmax.f32 %v877, 0.0
    %v1130 = vmax.f32 %v880, 0.0
    %v1131 = vmax.f32 %v885, 0.0
    %v1132 = vmax.f32 %v888, 0.0
    %v1133 = vmax.f32 %v893, 0.0
    %v1134 = vmax.f32 %v896, 0.0
    %v1135 = vmax.f32 %v901, 0.0
    %v1136 = vmax.f32 %v904, 0.0
    %v1137 = vmax.f32 %v909, 0.0
    %v1138 = vmax.f32 %v912, 0.0
    %v1139 = vmax.f32 %v917, 0.0
    %v1140 = vmax.f32 %v920, 0.0
    %v1141 = vmax.f32 %v925, 0.0
    %v1142 = vmax.f32 %v928, 0.0
    %v1143 = vmax.f32 %v933, 0.0
    %v1144 = vmax.f32 %v936, 0.0
    %v1145 = vmax.f32 %v941, 0.0
    %v1146 = vmax.f32 %v944, 0.0
    %v1147 = vmax.f32 %v949, 0.0
    %v1148 = vmax.f32 %v952, 0.0
    %v1149 = vmax.f32 %v957, 0.0
    %v1150 = vmax.f32 %v960, 0.0
    %v1151 = vmax.f32 %v965, 0.0
    %v1152 = vmax.f32 %v968, 0.0
    %v1153 = vmax.f32 %v973, 0.0
    %v1154 = vmax.f32 %v976, 0.0
    %v1155 = vmax.f32 %v981, 0.0
    %v1156 = vmax.f32 %v984, 0.0
    %v1157 = vmax.f32 %v989, 0.0
    %v1158 = vmax.f32 %v992, 0.0
    %v1159 = vmax.f32 %v997, 0.0
    %v1160 = vmax.f32 %v1000, 0.0
    %v1161 = vmax.f32 %v1005, 0.0
    %v1162 = vmax.f32 %v1008, 0.0
    %v1163 = vmax.f32 %v1013, 0.0
    %v1164 = vmax.f32 %v1016, 0.0
    %v1165 = vmax.f32 %v1021, 0.0
    %v1166 = vmax.f32 %v1024, 0.0
    %v1167 = vmax.f32 %v1029, 0.0
    %v1168 = vmax.f32 %v1032, 0.0
    %v1169 = vmax.f32 %v1037, 0.0
    %v1170 = vmax.f32 %v1040, 0.0
    %v1171 = vpack.c.bf16 %v1044, %v1043
    %v1172 = vpack.c.bf16 %v1046, %v1045
    %v1173 = vpack.c.bf16 %v1048, %v1047
    %v1174 = vpack.c.bf16 %v1050, %v1049
    %v1175 = vpack.c.bf16 %v1052, %v1051
    %v1176 = vpack.c.bf16 %v1054, %v1053
    %v1177 = vpack.c.bf16 %v1056, %v1055
    %v1178 = vpack.c.bf16 %v1058, %v1057
    %v1179 = vpack.c.bf16 %v1060, %v1059
    %v1180 = vpack.c.bf16 %v1062, %v1061
    %v1181 = vpack.c.bf16 %v1064, %v1063
    %v1182 = vpack.c.bf16 %v1066, %v1065
    %v1183 = vpack.c.bf16 %v1068, %v1067
    %v1184 = vpack.c.bf16 %v1070, %v1069
    %v1185 = vpack.c.bf16 %v1072, %v1071
    %v1186 = vpack.c.bf16 %v1074, %v1073
    %v1187 = vpack.c.bf16 %v1076, %v1075
    %v1188 = vpack.c.bf16 %v1078, %v1077
    %v1189 = vpack.c.bf16 %v1080, %v1079
    %v1190 = vpack.c.bf16 %v1082, %v1081
    %v1191 = vpack.c.bf16 %v1084, %v1083
    %v1192 = vpack.c.bf16 %v1086, %v1085
    %v1193 = vpack.c.bf16 %v1088, %v1087
    %v1194 = vpack.c.bf16 %v1090, %v1089
    %v1195 = vpack.c.bf16 %v1092, %v1091
    %v1196 = vpack.c.bf16 %v1094, %v1093
    %v1197 = vpack.c.bf16 %v1096, %v1095
    %v1198 = vpack.c.bf16 %v1098, %v1097
    %v1199 = vpack.c.bf16 %v1100, %v1099
    %v1200 = vpack.c.bf16 %v1102, %v1101
    %v1201 = vpack.c.bf16 %v1104, %v1103
    %v1202 = vpack.c.bf16 %v1106, %v1105
    %v1203 = vpack.c.bf16 %v1108, %v1107
    %v1204 = vpack.c.bf16 %v1110, %v1109
    %v1205 = vpack.c.bf16 %v1112, %v1111
    %v1206 = vpack.c.bf16 %v1114, %v1113
    %v1207 = vpack.c.bf16 %v1116, %v1115
    %v1208 = vpack.c.bf16 %v1118, %v1117
    %v1209 = vpack.c.bf16 %v1120, %v1119
    %v1210 = vpack.c.bf16 %v1122, %v1121
    %v1211 = vpack.c.bf16 %v1124, %v1123
    %v1212 = vpack.c.bf16 %v1126, %v1125
    %v1213 = vpack.c.bf16 %v1128, %v1127
    %v1214 = vpack.c.bf16 %v1130, %v1129
    %v1215 = vpack.c.bf16 %v1132, %v1131
    %v1216 = vpack.c.bf16 %v1134, %v1133
    %v1217 = vpack.c.bf16 %v1136, %v1135
    %v1218 = vpack.c.bf16 %v1138, %v1137
    %v1219 = vpack.c.bf16 %v1140, %v1139
    %v1220 = vpack.c.bf16 %v1142, %v1141
    %v1221 = vpack.c.bf16 %v1144, %v1143
    %v1222 = vpack.c.bf16 %v1146, %v1145
    %v1223 = vpack.c.bf16 %v1148, %v1147
    %v1224 = vpack.c.bf16 %v1150, %v1149
    %v1225 = vpack.c.bf16 %v1152, %v1151
    %v1226 = vpack.c.bf16 %v1154, %v1153
    %v1227 = vpack.c.bf16 %v1156, %v1155
    %v1228 = vpack.c.bf16 %v1158, %v1157
    %v1229 = vpack.c.bf16 %v1160, %v1159
    %v1230 = vpack.c.bf16 %v1162, %v1161
    %v1231 = vpack.c.bf16 %v1164, %v1163
    %v1232 = vpack.c.bf16 %v1166, %v1165
    %v1233 = vpack.c.bf16 %v1168, %v1167
    %v1234 = vpack.c.bf16 %v1170, %v1169
    %v1236 = vlaneseq
    %v1237 = vshrl.u32 %v1236, 7
    %v1238 = vsub.s32 0, %v1237
    %v1239 = vrot.slane %v92, %v1238
    %v1257 = vunpack.c.l.b16 %v76
    %v1258 = vunpack.c.l.b16 %v77
    %v1259 = vunpack.c.l.b16 %v78
    %v1260 = vunpack.c.l.b16 %v79
    %v1261 = vunpack.c.l.b16 %v80
    %v1262 = vunpack.c.l.b16 %v81
    %v1263 = vunpack.c.l.b16 %v82
    %v1264 = vunpack.c.l.b16 %v83
    %v1265 = vunpack.c.l.b16 %v84
    %v1266 = vunpack.c.l.b16 %v85
    %v1267 = vunpack.c.l.b16 %v86
    %v1268 = vunpack.c.l.b16 %v87
    %v1269 = vunpack.c.l.b16 %v88
    %v1270 = vunpack.c.l.b16 %v89
    %v1271 = vunpack.c.l.b16 %v90
    %v1272 = vunpack.c.l.b16 %v91
    %v1273 = vpack.c.b16 %v1258, %v1257
    %v1274 = vpack.c.b16 %v1260, %v1259
    %v1275 = vpack.c.b16 %v1262, %v1261
    %v1276 = vpack.c.b16 %v1264, %v1263
    %v1277 = vpack.c.b16 %v1266, %v1265
    %v1278 = vpack.c.b16 %v1268, %v1267
    %v1279 = vpack.c.b16 %v1270, %v1269
    %v1280 = vpack.c.b16 %v1272, %v1271
    %1289 = vmatprep.subr.bf16.mxu0 0
    %1290 = vmatpush1.bf16.msra.mxu0 %v1273
    %1291 = vmatprep.subr.bf16.mxu0 0
    %1292 = vmatpush1.bf16.msra.mxu0 %v1274
    %1293 = vmatprep.subr.bf16.mxu0 0
    %1294 = vmatpush1.bf16.msra.mxu0 %v1275
    %1295 = vmatprep.subr.bf16.mxu0 0
    %1296 = vmatpush1.bf16.msra.mxu0 %v1276
    %1297 = vmatprep.subr.bf16.mxu0 0
    %1298 = vmatpush1.bf16.msra.mxu0 %v1277
    %1299 = vmatprep.subr.bf16.mxu0 0
    %1300 = vmatpush1.bf16.msra.mxu0 %v1278
    %1301 = vmatprep.subr.bf16.mxu0 0
    %1302 = vmatpush1.bf16.msra.mxu0 %v1279
    %1303 = vmatprep.subr.bf16.mxu0 0
    %1304 = vmatpush1.bf16.msra.mxu0 %v1280
    %1305 = vmatprep.subr.bf16.mxu0 0
    %1306 = vmatpush1.bf16.msra.mxu0 0
    %1307 = vmatprep.subr.bf16.mxu0 0
    %1308 = vmatpush1.bf16.msra.mxu0 0
    %1309 = vmatprep.subr.bf16.mxu0 0
    %1310 = vmatpush1.bf16.msra.mxu0 0
    %1311 = vmatprep.subr.bf16.mxu0 0
    %1312 = vmatpush1.bf16.msra.mxu0 0
    %1313 = vmatprep.subr.bf16.mxu0 0
    %1314 = vmatpush1.bf16.msra.mxu0 0
    %1315 = vmatprep.subr.bf16.mxu0 0
    %1316 = vmatpush1.bf16.msra.mxu0 0
    %1317 = vmatprep.subr.bf16.mxu0 0
    %1318 = vmatpush1.bf16.msra.mxu0 0
    %1319 = vmatprep.subr.bf16.mxu0 0
    %1320 = vmatpush1.bf16.msra.mxu0 0
    %1321 = vmatprep.mubr.bf16.mxu0 0
    %1322 = vmatmul.mubr.bf16.gmra.mrb[0].mxu0 %v1171
    %v1323 = vpop.f32.mrb[0].mxu0
    %v1324 = vadd.f32 %v1239, %v1323
    %v1325 = vpop.f32.mrb[0].mxu0
    %v1326 = vpop.f32.mrb[0].mxu0
    %v1327 = vadd.f32 %v1239, %v1326
    %v1328 = vpop.f32.mrb[0].mxu0
    %1329 = vmatprep.mubr.bf16.mxu0 0
    %1330 = vmatmul.mubr.bf16.gmra.mrb[0].mxu0 %v1172
    %v1331 = vpop.f32.mrb[0].mxu0
    %v1332 = vadd.f32 %v1239, %v1331
    %v1333 = vpop.f32.mrb[0].mxu0
    %v1334 = vpop.f32.mrb[0].mxu0
    %v1335 = vadd.f32 %v1239, %v1334
    %v1336 = vpop.f32.mrb[0].mxu0
    %1337 = vmatprep.mubr.bf16.mxu0 0
    %1338 = vmatmul.mubr.bf16.gmra.mrb[0].mxu0 %v1173
    %v1339 = vpop.f32.mrb[0].mxu0
    %v1340 = vadd.f32 %v1239, %v1339
    %v1341 = vpop.f32.mrb[0].mxu0
    %v1342 = vpop.f32.mrb[0].mxu0
    %v1343 = vadd.f32 %v1239, %v1342
    %v1344 = vpop.f32.mrb[0].mxu0
    %1345 = vmatprep.mubr.bf16.mxu0 0
    %1346 = vmatmul.mubr.bf16.gmra.mrb[0].mxu0 %v1174
    %v1347 = vpop.f32.mrb[0].mxu0
    %v1348 = vadd.f32 %v1239, %v1347
    %v1349 = vpop.f32.mrb[0].mxu0
    %v1350 = vpop.f32.mrb[0].mxu0
    %v1351 = vadd.f32 %v1239, %v1350
    %v1352 = vpop.f32.mrb[0].mxu0
    %1353 = vmatprep.mubr.bf16.mxu0 0
    %1354 = vmatmul.mubr.bf16.gmra.mrb[0].mxu0 %v1175
    %v1355 = vpop.f32.mrb[0].mxu0
    %v1356 = vadd.f32 %v1239, %v1355
    %v1357 = vpop.f32.mrb[0].mxu0
    %v1358 = vpop.f32.mrb[0].mxu0
    %v1359 = vadd.f32 %v1239, %v1358
    %v1360 = vpop.f32.mrb[0].mxu0
    %1361 = vmatprep.mubr.bf16.mxu0 0
    %1362 = vmatmul.mubr.bf16.gmra.mrb[0].mxu0 %v1176
    %v1363 = vpop.f32.mrb[0].mxu0
    %v1364 = vadd.f32 %v1239, %v1363
    %v1365 = vpop.f32.mrb[0].mxu0
    %v1366 = vpop.f32.mrb[0].mxu0
    %v1367 = vadd.f32 %v1239, %v1366
    %v1368 = vpop.f32.mrb[0].mxu0
    %1369 = vmatprep.mubr.bf16.mxu0 0
    %1370 = vmatmul.mubr.bf16.gmra.mrb[0].mxu0 %v1177
    %v1371 = vpop.f32.mrb[0].mxu0
    %v1372 = vadd.f32 %v1239, %v1371
    %v1373 = vpop.f32.mrb[0].mxu0
    %v1374 = vpop.f32.mrb[0].mxu0
    %v1375 = vadd.f32 %v1239, %v1374
    %v1376 = vpop.f32.mrb[0].mxu0
    %1377 = vmatprep.mubr.bf16.mxu0 0
    %1378 = vmatmul.mubr.bf16.gmra.mrb[0].mxu0 %v1178
    %v1379 = vpop.f32.mrb[0].mxu0
    %v1380 = vadd.f32 %v1239, %v1379
    %v1381 = vpop.f32.mrb[0].mxu0
    %v1382 = vpop.f32.mrb[0].mxu0
    %v1383 = vadd.f32 %v1239, %v1382
    %v1384 = vpop.f32.mrb[0].mxu0
    %1385 = vmatprep.mubr.bf16.mxu0 0
    %1386 = vmatmul.mubr.bf16.gmra.mrb[0].mxu0 %v1179
    %v1387 = vpop.f32.mrb[0].mxu0
    %v1388 = vadd.f32 %v1239, %v1387
    %v1389 = vpop.f32.mrb[0].mxu0
    %v1390 = vpop.f32.mrb[0].mxu0
    %v1391 = vadd.f32 %v1239, %v1390
    %v1392 = vpop.f32.mrb[0].mxu0
    %1393 = vmatprep.mubr.bf16.mxu0 0
    %1394 = vmatmul.mubr.bf16.gmra.mrb[0].mxu0 %v1180
    %v1395 = vpop.f32.mrb[0].mxu0
    %v1396 = vadd.f32 %v1239, %v1395
    %v1397 = vpop.f32.mrb[0].mxu0
    %v1398 = vpop.f32.mrb[0].mxu0
    %v1399 = vadd.f32 %v1239, %v1398
    %v1400 = vpop.f32.mrb[0].mxu0
    %1401 = vmatprep.mubr.bf16.mxu0 0
    %1402 = vmatmul.mubr.bf16.gmra.mrb[0].mxu0 %v1181
    %v1403 = vpop.f32.mrb[0].mxu0
    %v1404 = vadd.f32 %v1239, %v1403
    %v1405 = vpop.f32.mrb[0].mxu0
    %v1406 = vpop.f32.mrb[0].mxu0
    %v1407 = vadd.f32 %v1239, %v1406
    %v1408 = vpop.f32.mrb[0].mxu0
    %1409 = vmatprep.mubr.bf16.mxu0 0
    %1410 = vmatmul.mubr.bf16.gmra.mrb[0].mxu0 %v1182
    %v1411 = vpop.f32.mrb[0].mxu0
    %v1412 = vadd.f32 %v1239, %v1411
    %v1413 = vpop.f32.mrb[0].mxu0
    %v1414 = vpop.f32.mrb[0].mxu0
    %v1415 = vadd.f32 %v1239, %v1414
    %v1416 = vpop.f32.mrb[0].mxu0
    %1417 = vmatprep.mubr.bf16.mxu0 0
    %1418 = vmatmul.mubr.bf16.gmra.mrb[0].mxu0 %v1183
    %v1419 = vpop.f32.mrb[0].mxu0
    %v1420 = vadd.f32 %v1239, %v1419
    %v1421 = vpop.f32.mrb[0].mxu0
    %v1422 = vpop.f32.mrb[0].mxu0
    %v1423 = vadd.f32 %v1239, %v1422
    %v1424 = vpop.f32.mrb[0].mxu0
    %1425 = vmatprep.mubr.bf16.mxu0 0
    %1426 = vmatmul.mubr.bf16.gmra.mrb[0].mxu0 %v1184
    %v1427 = vpop.f32.mrb[0].mxu0
    %v1428 = vadd.f32 %v1239, %v1427
    %v1429 = vpop.f32.mrb[0].mxu0
    %v1430 = vpop.f32.mrb[0].mxu0
    %v1431 = vadd.f32 %v1239, %v1430
    %v1432 = vpop.f32.mrb[0].mxu0
    %1433 = vmatprep.mubr.bf16.mxu0 0
    %1434 = vmatmul.mubr.bf16.gmra.mrb[0].mxu0 %v1185
    %v1435 = vpop.f32.mrb[0].mxu0
    %v1436 = vadd.f32 %v1239, %v1435
    %v1437 = vpop.f32.mrb[0].mxu0
    %v1438 = vpop.f32.mrb[0].mxu0
    %v1439 = vadd.f32 %v1239, %v1438
    %v1440 = vpop.f32.mrb[0].mxu0
    %1441 = vmatprep.mubr.bf16.mxu0 0
    %1442 = vmatmul.mubr.bf16.gmra.mrb[0].mxu0 %v1186
    %v1443 = vpop.f32.mrb[0].mxu0
    %v1444 = vadd.f32 %v1239, %v1443
    %v1445 = vpop.f32.mrb[0].mxu0
    %v1446 = vpop.f32.mrb[0].mxu0
    %v1447 = vadd.f32 %v1239, %v1446
    %v1448 = vpop.f32.mrb[0].mxu0
    %1449 = vmatprep.mubr.bf16.mxu0 0
    %1450 = vmatmul.mubr.bf16.gmra.mrb[0].mxu0 %v1187
    %v1451 = vpop.f32.mrb[0].mxu0
    %v1452 = vadd.f32 %v1239, %v1451
    %v1453 = vpop.f32.mrb[0].mxu0
    %v1454 = vpop.f32.mrb[0].mxu0
    %v1455 = vadd.f32 %v1239, %v1454
    %v1456 = vpop.f32.mrb[0].mxu0
    %1457 = vmatprep.mubr.bf16.mxu0 0
    %1458 = vmatmul.mubr.bf16.gmra.mrb[0].mxu0 %v1188
    %v1459 = vpop.f32.mrb[0].mxu0
    %v1460 = vadd.f32 %v1239, %v1459
    %v1461 = vpop.f32.mrb[0].mxu0
    %v1462 = vpop.f32.mrb[0].mxu0
    %v1463 = vadd.f32 %v1239, %v1462
    %v1464 = vpop.f32.mrb[0].mxu0
    %1465 = vmatprep.mubr.bf16.mxu0 0
    %1466 = vmatmul.mubr.bf16.gmra.mrb[0].mxu0 %v1189
    %v1467 = vpop.f32.mrb[0].mxu0
    %v1468 = vadd.f32 %v1239, %v1467
    %v1469 = vpop.f32.mrb[0].mxu0
    %v1470 = vpop.f32.mrb[0].mxu0
    %v1471 = vadd.f32 %v1239, %v1470
    %v1472 = vpop.f32.mrb[0].mxu0
    %1473 = vmatprep.mubr.bf16.mxu0 0
    %1474 = vmatmul.mubr.bf16.gmra.mrb[0].mxu0 %v1190
    %v1475 = vpop.f32.mrb[0].mxu0
    %v1476 = vadd.f32 %v1239, %v1475
    %v1477 = vpop.f32.mrb[0].mxu0
    %v1478 = vpop.f32.mrb[0].mxu0
    %v1479 = vadd.f32 %v1239, %v1478
    %v1480 = vpop.f32.mrb[0].mxu0
    %1481 = vmatprep.mubr.bf16.mxu0 0
    %1482 = vmatmul.mubr.bf16.gmra.mrb[0].mxu0 %v1191
    %v1483 = vpop.f32.mrb[0].mxu0
    %v1484 = vadd.f32 %v1239, %v1483
    %v1485 = vpop.f32.mrb[0].mxu0
    %v1486 = vpop.f32.mrb[0].mxu0
    %v1487 = vadd.f32 %v1239, %v1486
    %v1488 = vpop.f32.mrb[0].mxu0
    %1489 = vmatprep.mubr.bf16.mxu0 0
    %1490 = vmatmul.mubr.bf16.gmra.mrb[0].mxu0 %v1192
    %v1491 = vpop.f32.mrb[0].mxu0
    %v1492 = vadd.f32 %v1239, %v1491
    %v1493 = vpop.f32.mrb[0].mxu0
    %v1494 = vpop.f32.mrb[0].mxu0
    %v1495 = vadd.f32 %v1239, %v1494
    %v1496 = vpop.f32.mrb[0].mxu0
    %1497 = vmatprep.mubr.bf16.mxu0 0
    %1498 = vmatmul.mubr.bf16.gmra.mrb[0].mxu0 %v1193
    %v1499 = vpop.f32.mrb[0].mxu0
    %v1500 = vadd.f32 %v1239, %v1499
    %v1501 = vpop.f32.mrb[0].mxu0
    %v1502 = vpop.f32.mrb[0].mxu0
    %v1503 = vadd.f32 %v1239, %v1502
    %v1504 = vpop.f32.mrb[0].mxu0
    %1505 = vmatprep.mubr.bf16.mxu0 0
    %1506 = vmatmul.mubr.bf16.gmra.mrb[0].mxu0 %v1194
    %v1507 = vpop.f32.mrb[0].mxu0
    %v1508 = vadd.f32 %v1239, %v1507
    %v1509 = vpop.f32.mrb[0].mxu0
    %v1510 = vpop.f32.mrb[0].mxu0
    %v1511 = vadd.f32 %v1239, %v1510
    %v1512 = vpop.f32.mrb[0].mxu0
    %1513 = vmatprep.mubr.bf16.mxu0 0
    %1514 = vmatmul.mubr.bf16.gmra.mrb[0].mxu0 %v1195
    %v1515 = vpop.f32.mrb[0].mxu0
    %v1516 = vadd.f32 %v1239, %v1515
    %v1517 = vpop.f32.mrb[0].mxu0
    %v1518 = vpop.f32.mrb[0].mxu0
    %v1519 = vadd.f32 %v1239, %v1518
    %v1520 = vpop.f32.mrb[0].mxu0
    %1521 = vmatprep.mubr.bf16.mxu0 0
    %1522 = vmatmul.mubr.bf16.gmra.mrb[0].mxu0 %v1196
    %v1523 = vpop.f32.mrb[0].mxu0
    %v1524 = vadd.f32 %v1239, %v1523
    %v1525 = vpop.f32.mrb[0].mxu0
    %v1526 = vpop.f32.mrb[0].mxu0
    %v1527 = vadd.f32 %v1239, %v1526
    %v1528 = vpop.f32.mrb[0].mxu0
    %1529 = vmatprep.mubr.bf16.mxu0 0
    %1530 = vmatmul.mubr.bf16.gmra.mrb[0].mxu0 %v1197
    %v1531 = vpop.f32.mrb[0].mxu0
    %v1532 = vadd.f32 %v1239, %v1531
    %v1533 = vpop.f32.mrb[0].mxu0
    %v1534 = vpop.f32.mrb[0].mxu0
    %v1535 = vadd.f32 %v1239, %v1534
    %v1536 = vpop.f32.mrb[0].mxu0
    %1537 = vmatprep.mubr.bf16.mxu0 0
    %1538 = vmatmul.mubr.bf16.gmra.mrb[0].mxu0 %v1198
    %v1539 = vpop.f32.mrb[0].mxu0
    %v1540 = vadd.f32 %v1239, %v1539
    %v1541 = vpop.f32.mrb[0].mxu0
    %v1542 = vpop.f32.mrb[0].mxu0
    %v1543 = vadd.f32 %v1239, %v1542
    %v1544 = vpop.f32.mrb[0].mxu0
    %1545 = vmatprep.mubr.bf16.mxu0 0
    %1546 = vmatmul.mubr.bf16.gmra.mrb[0].mxu0 %v1199
    %v1547 = vpop.f32.mrb[0].mxu0
    %v1548 = vadd.f32 %v1239, %v1547
    %v1549 = vpop.f32.mrb[0].mxu0
    %v1550 = vpop.f32.mrb[0].mxu0
    %v1551 = vadd.f32 %v1239, %v1550
    %v1552 = vpop.f32.mrb[0].mxu0
    %1553 = vmatprep.mubr.bf16.mxu0 0
    %1554 = vmatmul.mubr.bf16.gmra.mrb[0].mxu0 %v1200
    %v1555 = vpop.f32.mrb[0].mxu0
    %v1556 = vadd.f32 %v1239, %v1555
    %v1557 = vpop.f32.mrb[0].mxu0
    %v1558 = vpop.f32.mrb[0].mxu0
    %v1559 = vadd.f32 %v1239, %v1558
    %v1560 = vpop.f32.mrb[0].mxu0
    %1561 = vmatprep.mubr.bf16.mxu0 0
    %1562 = vmatmul.mubr.bf16.gmra.mrb[0].mxu0 %v1201
    %v1563 = vpop.f32.mrb[0].mxu0
    %v1564 = vadd.f32 %v1239, %v1563
    %v1565 = vpop.f32.mrb[0].mxu0
    %v1566 = vpop.f32.mrb[0].mxu0
    %v1567 = vadd.f32 %v1239, %v1566
    %v1568 = vpop.f32.mrb[0].mxu0
    %1569 = vmatprep.mubr.bf16.mxu0 0
    %1570 = vmatmul.mubr.bf16.gmra.mrb[0].mxu0 %v1202
    %v1571 = vpop.f32.mrb[0].mxu0
    %v1572 = vadd.f32 %v1239, %v1571
    %v1573 = vpop.f32.mrb[0].mxu0
    %v1574 = vpop.f32.mrb[0].mxu0
    %v1575 = vadd.f32 %v1239, %v1574
    %v1576 = vpop.f32.mrb[0].mxu0
    %1577 = vmatprep.mubr.bf16.mxu0 0
    %1578 = vmatmul.mubr.bf16.gmra.mrb[0].mxu0 %v1203
    %v1579 = vpop.f32.mrb[0].mxu0
    %v1580 = vadd.f32 %v1239, %v1579
    %v1581 = vpop.f32.mrb[0].mxu0
    %v1582 = vpop.f32.mrb[0].mxu0
    %v1583 = vadd.f32 %v1239, %v1582
    %v1584 = vpop.f32.mrb[0].mxu0
    %1585 = vmatprep.mubr.bf16.mxu0 0
    %1586 = vmatmul.mubr.bf16.gmra.mrb[0].mxu0 %v1204
    %v1587 = vpop.f32.mrb[0].mxu0
    %v1588 = vadd.f32 %v1239, %v1587
    %v1589 = vpop.f32.mrb[0].mxu0
    %v1590 = vpop.f32.mrb[0].mxu0
    %v1591 = vadd.f32 %v1239, %v1590
    %v1592 = vpop.f32.mrb[0].mxu0
    %1593 = vmatprep.mubr.bf16.mxu0 0
    %1594 = vmatmul.mubr.bf16.gmra.mrb[0].mxu0 %v1205
    %v1595 = vpop.f32.mrb[0].mxu0
    %v1596 = vadd.f32 %v1239, %v1595
    %v1597 = vpop.f32.mrb[0].mxu0
    %v1598 = vpop.f32.mrb[0].mxu0
    %v1599 = vadd.f32 %v1239, %v1598
    %v1600 = vpop.f32.mrb[0].mxu0
    %1601 = vmatprep.mubr.bf16.mxu0 0
    %1602 = vmatmul.mubr.bf16.gmra.mrb[0].mxu0 %v1206
    %v1603 = vpop.f32.mrb[0].mxu0
    %v1604 = vadd.f32 %v1239, %v1603
    %v1605 = vpop.f32.mrb[0].mxu0
    %v1606 = vpop.f32.mrb[0].mxu0
    %v1607 = vadd.f32 %v1239, %v1606
    %v1608 = vpop.f32.mrb[0].mxu0
    %1609 = vmatprep.mubr.bf16.mxu0 0
    %1610 = vmatmul.mubr.bf16.gmra.mrb[0].mxu0 %v1207
    %v1611 = vpop.f32.mrb[0].mxu0
    %v1612 = vadd.f32 %v1239, %v1611
    %v1613 = vpop.f32.mrb[0].mxu0
    %v1614 = vpop.f32.mrb[0].mxu0
    %v1615 = vadd.f32 %v1239, %v1614
    %v1616 = vpop.f32.mrb[0].mxu0
    %1617 = vmatprep.mubr.bf16.mxu0 0
    %1618 = vmatmul.mubr.bf16.gmra.mrb[0].mxu0 %v1208
    %v1619 = vpop.f32.mrb[0].mxu0
    %v1620 = vadd.f32 %v1239, %v1619
    %v1621 = vpop.f32.mrb[0].mxu0
    %v1622 = vpop.f32.mrb[0].mxu0
    %v1623 = vadd.f32 %v1239, %v1622
    %v1624 = vpop.f32.mrb[0].mxu0
    %1625 = vmatprep.mubr.bf16.mxu0 0
    %1626 = vmatmul.mubr.bf16.gmra.mrb[0].mxu0 %v1209
    %v1627 = vpop.f32.mrb[0].mxu0
    %v1628 = vadd.f32 %v1239, %v1627
    %v1629 = vpop.f32.mrb[0].mxu0
    %v1630 = vpop.f32.mrb[0].mxu0
    %v1631 = vadd.f32 %v1239, %v1630
    %v1632 = vpop.f32.mrb[0].mxu0
    %1633 = vmatprep.mubr.bf16.mxu0 0
    %1634 = vmatmul.mubr.bf16.gmra.mrb[0].mxu0 %v1210
    %v1635 = vpop.f32.mrb[0].mxu0
    %v1636 = vadd.f32 %v1239, %v1635
    %v1637 = vpop.f32.mrb[0].mxu0
    %v1638 = vpop.f32.mrb[0].mxu0
    %v1639 = vadd.f32 %v1239, %v1638
    %v1640 = vpop.f32.mrb[0].mxu0
    %1641 = vmatprep.mubr.bf16.mxu0 0
    %1642 = vmatmul.mubr.bf16.gmra.mrb[0].mxu0 %v1211
    %v1643 = vpop.f32.mrb[0].mxu0
    %v1644 = vadd.f32 %v1239, %v1643
    %v1645 = vpop.f32.mrb[0].mxu0
    %v1646 = vpop.f32.mrb[0].mxu0
    %v1647 = vadd.f32 %v1239, %v1646
    %v1648 = vpop.f32.mrb[0].mxu0
    %1649 = vmatprep.mubr.bf16.mxu0 0
    %1650 = vmatmul.mubr.bf16.gmra.mrb[0].mxu0 %v1212
    %v1651 = vpop.f32.mrb[0].mxu0
    %v1652 = vadd.f32 %v1239, %v1651
    %v1653 = vpop.f32.mrb[0].mxu0
    %v1654 = vpop.f32.mrb[0].mxu0
    %v1655 = vadd.f32 %v1239, %v1654
    %v1656 = vpop.f32.mrb[0].mxu0
    %1657 = vmatprep.mubr.bf16.mxu0 0
    %1658 = vmatmul.mubr.bf16.gmra.mrb[0].mxu0 %v1213
    %v1659 = vpop.f32.mrb[0].mxu0
    %v1660 = vadd.f32 %v1239, %v1659
    %v1661 = vpop.f32.mrb[0].mxu0
    %v1662 = vpop.f32.mrb[0].mxu0
    %v1663 = vadd.f32 %v1239, %v1662
    %v1664 = vpop.f32.mrb[0].mxu0
    %1665 = vmatprep.mubr.bf16.mxu0 0
    %1666 = vmatmul.mubr.bf16.gmra.mrb[0].mxu0 %v1214
    %v1667 = vpop.f32.mrb[0].mxu0
    %v1668 = vadd.f32 %v1239, %v1667
    %v1669 = vpop.f32.mrb[0].mxu0
    %v1670 = vpop.f32.mrb[0].mxu0
    %v1671 = vadd.f32 %v1239, %v1670
    %v1672 = vpop.f32.mrb[0].mxu0
    %1673 = vmatprep.mubr.bf16.mxu0 0
    %1674 = vmatmul.mubr.bf16.gmra.mrb[0].mxu0 %v1215
    %v1675 = vpop.f32.mrb[0].mxu0
    %v1676 = vadd.f32 %v1239, %v1675
    %v1677 = vpop.f32.mrb[0].mxu0
    %v1678 = vpop.f32.mrb[0].mxu0
    %v1679 = vadd.f32 %v1239, %v1678
    %v1680 = vpop.f32.mrb[0].mxu0
    %1681 = vmatprep.mubr.bf16.mxu0 0
    %1682 = vmatmul.mubr.bf16.gmra.mrb[0].mxu0 %v1216
    %v1683 = vpop.f32.mrb[0].mxu0
    %v1684 = vadd.f32 %v1239, %v1683
    %v1685 = vpop.f32.mrb[0].mxu0
    %v1686 = vpop.f32.mrb[0].mxu0
    %v1687 = vadd.f32 %v1239, %v1686
    %v1688 = vpop.f32.mrb[0].mxu0
    %1689 = vmatprep.mubr.bf16.mxu0 0
    %1690 = vmatmul.mubr.bf16.gmra.mrb[0].mxu0 %v1217
    %v1691 = vpop.f32.mrb[0].mxu0
    %v1692 = vadd.f32 %v1239, %v1691
    %v1693 = vpop.f32.mrb[0].mxu0
    %v1694 = vpop.f32.mrb[0].mxu0
    %v1695 = vadd.f32 %v1239, %v1694
    %v1696 = vpop.f32.mrb[0].mxu0
    %1697 = vmatprep.mubr.bf16.mxu0 0
    %1698 = vmatmul.mubr.bf16.gmra.mrb[0].mxu0 %v1218
    %v1699 = vpop.f32.mrb[0].mxu0
    %v1700 = vadd.f32 %v1239, %v1699
    %v1701 = vpop.f32.mrb[0].mxu0
    %v1702 = vpop.f32.mrb[0].mxu0
    %v1703 = vadd.f32 %v1239, %v1702
    %v1704 = vpop.f32.mrb[0].mxu0
    %1705 = vmatprep.mubr.bf16.mxu0 0
    %1706 = vmatmul.mubr.bf16.gmra.mrb[0].mxu0 %v1219
    %v1707 = vpop.f32.mrb[0].mxu0
    %v1708 = vadd.f32 %v1239, %v1707
    %v1709 = vpop.f32.mrb[0].mxu0
    %v1710 = vpop.f32.mrb[0].mxu0
    %v1711 = vadd.f32 %v1239, %v1710
    %v1712 = vpop.f32.mrb[0].mxu0
    %1713 = vmatprep.mubr.bf16.mxu0 0
    %1714 = vmatmul.mubr.bf16.gmra.mrb[0].mxu0 %v1220
    %v1715 = vpop.f32.mrb[0].mxu0
    %v1716 = vadd.f32 %v1239, %v1715
    %v1717 = vpop.f32.mrb[0].mxu0
    %v1718 = vpop.f32.mrb[0].mxu0
    %v1719 = vadd.f32 %v1239, %v1718
    %v1720 = vpop.f32.mrb[0].mxu0
    %1721 = vmatprep.mubr.bf16.mxu0 0
    %1722 = vmatmul.mubr.bf16.gmra.mrb[0].mxu0 %v1221
    %v1723 = vpop.f32.mrb[0].mxu0
    %v1724 = vadd.f32 %v1239, %v1723
    %v1725 = vpop.f32.mrb[0].mxu0
    %v1726 = vpop.f32.mrb[0].mxu0
    %v1727 = vadd.f32 %v1239, %v1726
    %v1728 = vpop.f32.mrb[0].mxu0
    %1729 = vmatprep.mubr.bf16.mxu0 0
    %1730 = vmatmul.mubr.bf16.gmra.mrb[0].mxu0 %v1222
    %v1731 = vpop.f32.mrb[0].mxu0
    %v1732 = vadd.f32 %v1239, %v1731
    %v1733 = vpop.f32.mrb[0].mxu0
    %v1734 = vpop.f32.mrb[0].mxu0
    %v1735 = vadd.f32 %v1239, %v1734
    %v1736 = vpop.f32.mrb[0].mxu0
    %1737 = vmatprep.mubr.bf16.mxu0 0
    %1738 = vmatmul.mubr.bf16.gmra.mrb[0].mxu0 %v1223
    %v1739 = vpop.f32.mrb[0].mxu0
    %v1740 = vadd.f32 %v1239, %v1739
    %v1741 = vpop.f32.mrb[0].mxu0
    %v1742 = vpop.f32.mrb[0].mxu0
    %v1743 = vadd.f32 %v1239, %v1742
    %v1744 = vpop.f32.mrb[0].mxu0
    %1745 = vmatprep.mubr.bf16.mxu0 0
    %1746 = vmatmul.mubr.bf16.gmra.mrb[0].mxu0 %v1224
    %v1747 = vpop.f32.mrb[0].mxu0
    %v1748 = vadd.f32 %v1239, %v1747
    %v1749 = vpop.f32.mrb[0].mxu0
    %v1750 = vpop.f32.mrb[0].mxu0
    %v1751 = vadd.f32 %v1239, %v1750
    %v1752 = vpop.f32.mrb[0].mxu0
    %1753 = vmatprep.mubr.bf16.mxu0 0
    %1754 = vmatmul.mubr.bf16.gmra.mrb[0].mxu0 %v1225
    %v1755 = vpop.f32.mrb[0].mxu0
    %v1756 = vadd.f32 %v1239, %v1755
    %v1757 = vpop.f32.mrb[0].mxu0
    %v1758 = vpop.f32.mrb[0].mxu0
    %v1759 = vadd.f32 %v1239, %v1758
    %v1760 = vpop.f32.mrb[0].mxu0
    %1761 = vmatprep.mubr.bf16.mxu0 0
    %1762 = vmatmul.mubr.bf16.gmra.mrb[0].mxu0 %v1226
    %v1763 = vpop.f32.mrb[0].mxu0
    %v1764 = vadd.f32 %v1239, %v1763
    %v1765 = vpop.f32.mrb[0].mxu0
    %v1766 = vpop.f32.mrb[0].mxu0
    %v1767 = vadd.f32 %v1239, %v1766
    %v1768 = vpop.f32.mrb[0].mxu0
    %1769 = vmatprep.mubr.bf16.mxu0 0
    %1770 = vmatmul.mubr.bf16.gmra.mrb[0].mxu0 %v1227
    %v1771 = vpop.f32.mrb[0].mxu0
    %v1772 = vadd.f32 %v1239, %v1771
    %v1773 = vpop.f32.mrb[0].mxu0
    %v1774 = vpop.f32.mrb[0].mxu0
    %v1775 = vadd.f32 %v1239, %v1774
    %v1776 = vpop.f32.mrb[0].mxu0
    %1777 = vmatprep.mubr.bf16.mxu0 0
    %1778 = vmatmul.mubr.bf16.gmra.mrb[0].mxu0 %v1228
    %v1779 = vpop.f32.mrb[0].mxu0
    %v1780 = vadd.f32 %v1239, %v1779
    %v1781 = vpop.f32.mrb[0].mxu0
    %v1782 = vpop.f32.mrb[0].mxu0
    %v1783 = vadd.f32 %v1239, %v1782
    %v1784 = vpop.f32.mrb[0].mxu0
    %1785 = vmatprep.mubr.bf16.mxu0 0
    %1786 = vmatmul.mubr.bf16.gmra.mrb[0].mxu0 %v1229
    %v1787 = vpop.f32.mrb[0].mxu0
    %v1788 = vadd.f32 %v1239, %v1787
    %v1789 = vpop.f32.mrb[0].mxu0
    %v1790 = vpop.f32.mrb[0].mxu0
    %v1791 = vadd.f32 %v1239, %v1790
    %v1792 = vpop.f32.mrb[0].mxu0
    %1793 = vmatprep.mubr.bf16.mxu0 0
    %1794 = vmatmul.mubr.bf16.gmra.mrb[0].mxu0 %v1230
    %v1795 = vpop.f32.mrb[0].mxu0
    %v1796 = vadd.f32 %v1239, %v1795
    %v1797 = vpop.f32.mrb[0].mxu0
    %v1798 = vpop.f32.mrb[0].mxu0
    %v1799 = vadd.f32 %v1239, %v1798
    %v1800 = vpop.f32.mrb[0].mxu0
    %1801 = vmatprep.mubr.bf16.mxu0 0
    %1802 = vmatmul.mubr.bf16.gmra.mrb[0].mxu0 %v1231
    %v1803 = vpop.f32.mrb[0].mxu0
    %v1804 = vadd.f32 %v1239, %v1803
    %v1805 = vpop.f32.mrb[0].mxu0
    %v1806 = vpop.f32.mrb[0].mxu0
    %v1807 = vadd.f32 %v1239, %v1806
    %v1808 = vpop.f32.mrb[0].mxu0
    %1809 = vmatprep.mubr.bf16.mxu0 0
    %1810 = vmatmul.mubr.bf16.gmra.mrb[0].mxu0 %v1232
    %v1811 = vpop.f32.mrb[0].mxu0
    %v1812 = vadd.f32 %v1239, %v1811
    %v1813 = vpop.f32.mrb[0].mxu0
    %v1814 = vpop.f32.mrb[0].mxu0
    %v1815 = vadd.f32 %v1239, %v1814
    %v1816 = vpop.f32.mrb[0].mxu0
    %1817 = vmatprep.mubr.bf16.mxu0 0
    %1818 = vmatmul.mubr.bf16.gmra.mrb[0].mxu0 %v1233
    %v1819 = vpop.f32.mrb[0].mxu0
    %v1820 = vadd.f32 %v1239, %v1819
    %v1821 = vpop.f32.mrb[0].mxu0
    %v1822 = vpop.f32.mrb[0].mxu0
    %v1823 = vadd.f32 %v1239, %v1822
    %v1824 = vpop.f32.mrb[0].mxu0
    %1825 = vmatprep.mubr.bf16.mxu0 0
    %1826 = vmatmul.mubr.bf16.gmra.mrb[0].mxu0 %v1234
    %v1827 = vpop.f32.mrb[0].mxu0
    %v1828 = vadd.f32 %v1239, %v1827
    %v1829 = vpop.f32.mrb[0].mxu0
    %v1830 = vpop.f32.mrb[0].mxu0
    %v1831 = vadd.f32 %v1239, %v1830
    %v1832 = vpop.f32.mrb[0].mxu0
    %1833 = vdwg.mxu0
    %v1834 = vmax.f32 %v1324, 0.0
    %v1835 = vmax.f32 %v1327, 0.0
    %v1836 = vmax.f32 %v1332, 0.0
    %v1837 = vmax.f32 %v1335, 0.0
    %v1838 = vmax.f32 %v1340, 0.0
    %v1839 = vmax.f32 %v1343, 0.0
    %v1840 = vmax.f32 %v1348, 0.0
    %v1841 = vmax.f32 %v1351, 0.0
    %v1842 = vmax.f32 %v1356, 0.0
    %v1843 = vmax.f32 %v1359, 0.0
    %v1844 = vmax.f32 %v1364, 0.0
    %v1845 = vmax.f32 %v1367, 0.0
    %v1846 = vmax.f32 %v1372, 0.0
    %v1847 = vmax.f32 %v1375, 0.0
    %v1848 = vmax.f32 %v1380, 0.0
    %v1849 = vmax.f32 %v1383, 0.0
    %v1850 = vmax.f32 %v1388, 0.0
    %v1851 = vmax.f32 %v1391, 0.0
    %v1852 = vmax.f32 %v1396, 0.0
    %v1853 = vmax.f32 %v1399, 0.0
    %v1854 = vmax.f32 %v1404, 0.0
    %v1855 = vmax.f32 %v1407, 0.0
    %v1856 = vmax.f32 %v1412, 0.0
    %v1857 = vmax.f32 %v1415, 0.0
    %v1858 = vmax.f32 %v1420, 0.0
    %v1859 = vmax.f32 %v1423, 0.0
    %v1860 = vmax.f32 %v1428, 0.0
    %v1861 = vmax.f32 %v1431, 0.0
    %v1862 = vmax.f32 %v1436, 0.0
    %v1863 = vmax.f32 %v1439, 0.0
    %v1864 = vmax.f32 %v1444, 0.0
    %v1865 = vmax.f32 %v1447, 0.0
    %v1866 = vmax.f32 %v1452, 0.0
    %v1867 = vmax.f32 %v1455, 0.0
    %v1868 = vmax.f32 %v1460, 0.0
    %v1869 = vmax.f32 %v1463, 0.0
    %v1870 = vmax.f32 %v1468, 0.0
    %v1871 = vmax.f32 %v1471, 0.0
    %v1872 = vmax.f32 %v1476, 0.0
    %v1873 = vmax.f32 %v1479, 0.0
    %v1874 = vmax.f32 %v1484, 0.0
    %v1875 = vmax.f32 %v1487, 0.0
    %v1876 = vmax.f32 %v1492, 0.0
    %v1877 = vmax.f32 %v1495, 0.0
    %v1878 = vmax.f32 %v1500, 0.0
    %v1879 = vmax.f32 %v1503, 0.0
    %v1880 = vmax.f32 %v1508, 0.0
    %v1881 = vmax.f32 %v1511, 0.0
    %v1882 = vmax.f32 %v1516, 0.0
    %v1883 = vmax.f32 %v1519, 0.0
    %v1884 = vmax.f32 %v1524, 0.0
    %v1885 = vmax.f32 %v1527, 0.0
    %v1886 = vmax.f32 %v1532, 0.0
    %v1887 = vmax.f32 %v1535, 0.0
    %v1888 = vmax.f32 %v1540, 0.0
    %v1889 = vmax.f32 %v1543, 0.0
    %v1890 = vmax.f32 %v1548, 0.0
    %v1891 = vmax.f32 %v1551, 0.0
    %v1892 = vmax.f32 %v1556, 0.0
    %v1893 = vmax.f32 %v1559, 0.0
    %v1894 = vmax.f32 %v1564, 0.0
    %v1895 = vmax.f32 %v1567, 0.0
    %v1896 = vmax.f32 %v1572, 0.0
    %v1897 = vmax.f32 %v1575, 0.0
    %v1898 = vmax.f32 %v1580, 0.0
    %v1899 = vmax.f32 %v1583, 0.0
    %v1900 = vmax.f32 %v1588, 0.0
    %v1901 = vmax.f32 %v1591, 0.0
    %v1902 = vmax.f32 %v1596, 0.0
    %v1903 = vmax.f32 %v1599, 0.0
    %v1904 = vmax.f32 %v1604, 0.0
    %v1905 = vmax.f32 %v1607, 0.0
    %v1906 = vmax.f32 %v1612, 0.0
    %v1907 = vmax.f32 %v1615, 0.0
    %v1908 = vmax.f32 %v1620, 0.0
    %v1909 = vmax.f32 %v1623, 0.0
    %v1910 = vmax.f32 %v1628, 0.0
    %v1911 = vmax.f32 %v1631, 0.0
    %v1912 = vmax.f32 %v1636, 0.0
    %v1913 = vmax.f32 %v1639, 0.0
    %v1914 = vmax.f32 %v1644, 0.0
    %v1915 = vmax.f32 %v1647, 0.0
    %v1916 = vmax.f32 %v1652, 0.0
    %v1917 = vmax.f32 %v1655, 0.0
    %v1918 = vmax.f32 %v1660, 0.0
    %v1919 = vmax.f32 %v1663, 0.0
    %v1920 = vmax.f32 %v1668, 0.0
    %v1921 = vmax.f32 %v1671, 0.0
    %v1922 = vmax.f32 %v1676, 0.0
    %v1923 = vmax.f32 %v1679, 0.0
    %v1924 = vmax.f32 %v1684, 0.0
    %v1925 = vmax.f32 %v1687, 0.0
    %v1926 = vmax.f32 %v1692, 0.0
    %v1927 = vmax.f32 %v1695, 0.0
    %v1928 = vmax.f32 %v1700, 0.0
    %v1929 = vmax.f32 %v1703, 0.0
    %v1930 = vmax.f32 %v1708, 0.0
    %v1931 = vmax.f32 %v1711, 0.0
    %v1932 = vmax.f32 %v1716, 0.0
    %v1933 = vmax.f32 %v1719, 0.0
    %v1934 = vmax.f32 %v1724, 0.0
    %v1935 = vmax.f32 %v1727, 0.0
    %v1936 = vmax.f32 %v1732, 0.0
    %v1937 = vmax.f32 %v1735, 0.0
    %v1938 = vmax.f32 %v1740, 0.0
    %v1939 = vmax.f32 %v1743, 0.0
    %v1940 = vmax.f32 %v1748, 0.0
    %v1941 = vmax.f32 %v1751, 0.0
    %v1942 = vmax.f32 %v1756, 0.0
    %v1943 = vmax.f32 %v1759, 0.0
    %v1944 = vmax.f32 %v1764, 0.0
    %v1945 = vmax.f32 %v1767, 0.0
    %v1946 = vmax.f32 %v1772, 0.0
    %v1947 = vmax.f32 %v1775, 0.0
    %v1948 = vmax.f32 %v1780, 0.0
    %v1949 = vmax.f32 %v1783, 0.0
    %v1950 = vmax.f32 %v1788, 0.0
    %v1951 = vmax.f32 %v1791, 0.0
    %v1952 = vmax.f32 %v1796, 0.0
    %v1953 = vmax.f32 %v1799, 0.0
    %v1954 = vmax.f32 %v1804, 0.0
    %v1955 = vmax.f32 %v1807, 0.0
    %v1956 = vmax.f32 %v1812, 0.0
    %v1957 = vmax.f32 %v1815, 0.0
    %v1958 = vmax.f32 %v1820, 0.0
    %v1959 = vmax.f32 %v1823, 0.0
    %v1960 = vmax.f32 %v1828, 0.0
    %v1961 = vmax.f32 %v1831, 0.0
    %v1963 = vlaneseq
    %v1964 = vshrl.u32 %v1963, 7
    %v1965 = vsub.s32 0, %v1964
    %v1966 = vrot.slane %v93, %v1965
    %v1968 = vmul.f32 %v1834, %v1966
    %v1969 = vmul.f32 %v1835, %v1966
    %v1970 = vmul.f32 %v1836, %v1966
    %v1971 = vmul.f32 %v1837, %v1966
    %v1972 = vmul.f32 %v1838, %v1966
    %v1973 = vmul.f32 %v1839, %v1966
    %v1974 = vmul.f32 %v1840, %v1966
    %v1975 = vmul.f32 %v1841, %v1966
    %v1976 = vmul.f32 %v1842, %v1966
    %v1977 = vmul.f32 %v1843, %v1966
    %v1978 = vmul.f32 %v1844, %v1966
    %v1979 = vmul.f32 %v1845, %v1966
    %v1980 = vmul.f32 %v1846, %v1966
    %v1981 = vmul.f32 %v1847, %v1966
    %v1982 = vmul.f32 %v1848, %v1966
    %v1983 = vmul.f32 %v1849, %v1966
    %v1984 = vmul.f32 %v1850, %v1966
    %v1985 = vmul.f32 %v1851, %v1966
    %v1986 = vmul.f32 %v1852, %v1966
    %v1987 = vmul.f32 %v1853, %v1966
    %v1988 = vmul.f32 %v1854, %v1966
    %v1989 = vmul.f32 %v1855, %v1966
    %v1990 = vmul.f32 %v1856, %v1966
    %v1991 = vmul.f32 %v1857, %v1966
    %v1992 = vmul.f32 %v1858, %v1966
    %v1993 = vmul.f32 %v1859, %v1966
    %v1994 = vmul.f32 %v1860, %v1966
    %v1995 = vmul.f32 %v1861, %v1966
    %v1996 = vmul.f32 %v1862, %v1966
    %v1997 = vmul.f32 %v1863, %v1966
    %v1998 = vmul.f32 %v1864, %v1966
    %v1999 = vmul.f32 %v1865, %v1966
    %v2000 = vmul.f32 %v1866, %v1966
    %v2001 = vmul.f32 %v1867, %v1966
    %v2002 = vmul.f32 %v1868, %v1966
    %v2003 = vmul.f32 %v1869, %v1966
    %v2004 = vmul.f32 %v1870, %v1966
    %v2005 = vmul.f32 %v1871, %v1966
    %v2006 = vmul.f32 %v1872, %v1966
    %v2007 = vmul.f32 %v1873, %v1966
    %v2008 = vmul.f32 %v1874, %v1966
    %v2009 = vmul.f32 %v1875, %v1966
    %v2010 = vmul.f32 %v1876, %v1966
    %v2011 = vmul.f32 %v1877, %v1966
    %v2012 = vmul.f32 %v1878, %v1966
    %v2013 = vmul.f32 %v1879, %v1966
    %v2014 = vmul.f32 %v1880, %v1966
    %v2015 = vmul.f32 %v1881, %v1966
    %v2016 = vmul.f32 %v1882, %v1966
    %v2017 = vmul.f32 %v1883, %v1966
    %v2018 = vmul.f32 %v1884, %v1966
    %v2019 = vmul.f32 %v1885, %v1966
    %v2020 = vmul.f32 %v1886, %v1966
    %v2021 = vmul.f32 %v1887, %v1966
    %v2022 = vmul.f32 %v1888, %v1966
    %v2023 = vmul.f32 %v1889, %v1966
    %v2024 = vmul.f32 %v1890, %v1966
    %v2025 = vmul.f32 %v1891, %v1966
    %v2026 = vmul.f32 %v1892, %v1966
    %v2027 = vmul.f32 %v1893, %v1966
    %v2028 = vmul.f32 %v1894, %v1966
    %v2029 = vmul.f32 %v1895, %v1966
    %v2030 = vmul.f32 %v1896, %v1966
    %v2031 = vmul.f32 %v1897, %v1966
    %v2032 = vmul.f32 %v1898, %v1966
    %v2033 = vmul.f32 %v1899, %v1966
    %v2034 = vmul.f32 %v1900, %v1966
    %v2035 = vmul.f32 %v1901, %v1966
    %v2036 = vmul.f32 %v1902, %v1966
    %v2037 = vmul.f32 %v1903, %v1966
    %v2038 = vmul.f32 %v1904, %v1966
    %v2039 = vmul.f32 %v1905, %v1966
    %v2040 = vmul.f32 %v1906, %v1966
    %v2041 = vmul.f32 %v1907, %v1966
    %v2042 = vmul.f32 %v1908, %v1966
    %v2043 = vmul.f32 %v1909, %v1966
    %v2044 = vmul.f32 %v1910, %v1966
    %v2045 = vmul.f32 %v1911, %v1966
    %v2046 = vmul.f32 %v1912, %v1966
    %v2047 = vmul.f32 %v1913, %v1966
    %v2048 = vmul.f32 %v1914, %v1966
    %v2049 = vmul.f32 %v1915, %v1966
    %v2050 = vmul.f32 %v1916, %v1966
    %v2051 = vmul.f32 %v1917, %v1966
    %v2052 = vmul.f32 %v1918, %v1966
    %v2053 = vmul.f32 %v1919, %v1966
    %v2054 = vmul.f32 %v1920, %v1966
    %v2055 = vmul.f32 %v1921, %v1966
    %v2056 = vmul.f32 %v1922, %v1966
    %v2057 = vmul.f32 %v1923, %v1966
    %v2058 = vmul.f32 %v1924, %v1966
    %v2059 = vmul.f32 %v1925, %v1966
    %v2060 = vmul.f32 %v1926, %v1966
    %v2061 = vmul.f32 %v1927, %v1966
    %v2062 = vmul.f32 %v1928, %v1966
    %v2063 = vmul.f32 %v1929, %v1966
    %v2064 = vmul.f32 %v1930, %v1966
    %v2065 = vmul.f32 %v1931, %v1966
    %v2066 = vmul.f32 %v1932, %v1966
    %v2067 = vmul.f32 %v1933, %v1966
    %v2068 = vmul.f32 %v1934, %v1966
    %v2069 = vmul.f32 %v1935, %v1966
    %v2070 = vmul.f32 %v1936, %v1966
    %v2071 = vmul.f32 %v1937, %v1966
    %v2072 = vmul.f32 %v1938, %v1966
    %v2073 = vmul.f32 %v1939, %v1966
    %v2074 = vmul.f32 %v1940, %v1966
    %v2075 = vmul.f32 %v1941, %v1966
    %v2076 = vmul.f32 %v1942, %v1966
    %v2077 = vmul.f32 %v1943, %v1966
    %v2078 = vmul.f32 %v1944, %v1966
    %v2079 = vmul.f32 %v1945, %v1966
    %v2080 = vmul.f32 %v1946, %v1966
    %v2081 = vmul.f32 %v1947, %v1966
    %v2082 = vmul.f32 %v1948, %v1966
    %v2083 = vmul.f32 %v1949, %v1966
    %v2084 = vmul.f32 %v1950, %v1966
    %v2085 = vmul.f32 %v1951, %v1966
    %v2086 = vmul.f32 %v1952, %v1966
    %v2087 = vmul.f32 %v1953, %v1966
    %v2088 = vmul.f32 %v1954, %v1966
    %v2089 = vmul.f32 %v1955, %v1966
    %v2090 = vmul.f32 %v1956, %v1966
    %v2091 = vmul.f32 %v1957, %v1966
    %v2092 = vmul.f32 %v1958, %v1966
    %v2093 = vmul.f32 %v1959, %v1966
    %v2094 = vmul.f32 %v1960, %v1966
    %v2095 = vmul.f32 %v1961, %v1966
    %2096 = vadd.xlane.f32.xlu0 %v1968
    %v2097 = vpop.xlane.xlu0 %2096
    %2098 = vadd.xlane.f32.xlu0 %v1969
    %v2099 = vpop.xlane.xlu0 %2098
    %2100 = vadd.xlane.f32.xlu0 %v1970
    %v2101 = vpop.xlane.xlu0 %2100
    %2102 = vadd.xlane.f32.xlu0 %v1971
    %v2103 = vpop.xlane.xlu0 %2102
    %2104 = vadd.xlane.f32.xlu0 %v1972
    %v2105 = vpop.xlane.xlu0 %2104
    %2106 = vadd.xlane.f32.xlu0 %v1973
    %v2107 = vpop.xlane.xlu0 %2106
    %2108 = vadd.xlane.f32.xlu0 %v1974
    %v2109 = vpop.xlane.xlu0 %2108
    %2110 = vadd.xlane.f32.xlu0 %v1975
    %v2111 = vpop.xlane.xlu0 %2110
    %2112 = vadd.xlane.f32.xlu0 %v1976
    %v2113 = vpop.xlane.xlu0 %2112
    %2114 = vadd.xlane.f32.xlu0 %v1977
    %v2115 = vpop.xlane.xlu0 %2114
    %2116 = vadd.xlane.f32.xlu0 %v1978
    %v2117 = vpop.xlane.xlu0 %2116
    %2118 = vadd.xlane.f32.xlu0 %v1979
    %v2119 = vpop.xlane.xlu0 %2118
    %2120 = vadd.xlane.f32.xlu0 %v1980
    %v2121 = vpop.xlane.xlu0 %2120
    %2122 = vadd.xlane.f32.xlu0 %v1981
    %v2123 = vpop.xlane.xlu0 %2122
    %2124 = vadd.xlane.f32.xlu0 %v1982
    %v2125 = vpop.xlane.xlu0 %2124
    %2126 = vadd.xlane.f32.xlu0 %v1983
    %v2127 = vpop.xlane.xlu0 %2126
    %2128 = vadd.xlane.f32.xlu0 %v1984
    %v2129 = vpop.xlane.xlu0 %2128
    %2130 = vadd.xlane.f32.xlu0 %v1985
    %v2131 = vpop.xlane.xlu0 %2130
    %2132 = vadd.xlane.f32.xlu0 %v1986
    %v2133 = vpop.xlane.xlu0 %2132
    %2134 = vadd.xlane.f32.xlu0 %v1987
    %v2135 = vpop.xlane.xlu0 %2134
    %2136 = vadd.xlane.f32.xlu0 %v1988
    %v2137 = vpop.xlane.xlu0 %2136
    %2138 = vadd.xlane.f32.xlu0 %v1989
    %v2139 = vpop.xlane.xlu0 %2138
    %2140 = vadd.xlane.f32.xlu0 %v1990
    %v2141 = vpop.xlane.xlu0 %2140
    %2142 = vadd.xlane.f32.xlu0 %v1991
    %v2143 = vpop.xlane.xlu0 %2142
    %2144 = vadd.xlane.f32.xlu0 %v1992
    %v2145 = vpop.xlane.xlu0 %2144
    %2146 = vadd.xlane.f32.xlu0 %v1993
    %v2147 = vpop.xlane.xlu0 %2146
    %2148 = vadd.xlane.f32.xlu0 %v1994
    %v2149 = vpop.xlane.xlu0 %2148
    %2150 = vadd.xlane.f32.xlu0 %v1995
    %v2151 = vpop.xlane.xlu0 %2150
    %2152 = vadd.xlane.f32.xlu0 %v1996
    %v2153 = vpop.xlane.xlu0 %2152
    %2154 = vadd.xlane.f32.xlu0 %v1997
    %v2155 = vpop.xlane.xlu0 %2154
    %2156 = vadd.xlane.f32.xlu0 %v1998
    %v2157 = vpop.xlane.xlu0 %2156
    %2158 = vadd.xlane.f32.xlu0 %v1999
    %v2159 = vpop.xlane.xlu0 %2158
    %2160 = vadd.xlane.f32.xlu0 %v2000
    %v2161 = vpop.xlane.xlu0 %2160
    %2162 = vadd.xlane.f32.xlu0 %v2001
    %v2163 = vpop.xlane.xlu0 %2162
    %2164 = vadd.xlane.f32.xlu0 %v2002
    %v2165 = vpop.xlane.xlu0 %2164
    %2166 = vadd.xlane.f32.xlu0 %v2003
    %v2167 = vpop.xlane.xlu0 %2166
    %2168 = vadd.xlane.f32.xlu0 %v2004
    %v2169 = vpop.xlane.xlu0 %2168
    %2170 = vadd.xlane.f32.xlu0 %v2005
    %v2171 = vpop.xlane.xlu0 %2170
    %2172 = vadd.xlane.f32.xlu0 %v2006
    %v2173 = vpop.xlane.xlu0 %2172
    %2174 = vadd.xlane.f32.xlu0 %v2007
    %v2175 = vpop.xlane.xlu0 %2174
    %2176 = vadd.xlane.f32.xlu0 %v2008
    %v2177 = vpop.xlane.xlu0 %2176
    %2178 = vadd.xlane.f32.xlu0 %v2009
    %v2179 = vpop.xlane.xlu0 %2178
    %2180 = vadd.xlane.f32.xlu0 %v2010
    %v2181 = vpop.xlane.xlu0 %2180
    %2182 = vadd.xlane.f32.xlu0 %v2011
    %v2183 = vpop.xlane.xlu0 %2182
    %2184 = vadd.xlane.f32.xlu0 %v2012
    %v2185 = vpop.xlane.xlu0 %2184
    %2186 = vadd.xlane.f32.xlu0 %v2013
    %v2187 = vpop.xlane.xlu0 %2186
    %2188 = vadd.xlane.f32.xlu0 %v2014
    %v2189 = vpop.xlane.xlu0 %2188
    %2190 = vadd.xlane.f32.xlu0 %v2015
    %v2191 = vpop.xlane.xlu0 %2190
    %2192 = vadd.xlane.f32.xlu0 %v2016
    %v2193 = vpop.xlane.xlu0 %2192
    %2194 = vadd.xlane.f32.xlu0 %v2017
    %v2195 = vpop.xlane.xlu0 %2194
    %2196 = vadd.xlane.f32.xlu0 %v2018
    %v2197 = vpop.xlane.xlu0 %2196
    %2198 = vadd.xlane.f32.xlu0 %v2019
    %v2199 = vpop.xlane.xlu0 %2198
    %2200 = vadd.xlane.f32.xlu0 %v2020
    %v2201 = vpop.xlane.xlu0 %2200
    %2202 = vadd.xlane.f32.xlu0 %v2021
    %v2203 = vpop.xlane.xlu0 %2202
    %2204 = vadd.xlane.f32.xlu0 %v2022
    %v2205 = vpop.xlane.xlu0 %2204
    %2206 = vadd.xlane.f32.xlu0 %v2023
    %v2207 = vpop.xlane.xlu0 %2206
    %2208 = vadd.xlane.f32.xlu0 %v2024
    %v2209 = vpop.xlane.xlu0 %2208
    %2210 = vadd.xlane.f32.xlu0 %v2025
    %v2211 = vpop.xlane.xlu0 %2210
    %2212 = vadd.xlane.f32.xlu0 %v2026
    %v2213 = vpop.xlane.xlu0 %2212
    %2214 = vadd.xlane.f32.xlu0 %v2027
    %v2215 = vpop.xlane.xlu0 %2214
    %2216 = vadd.xlane.f32.xlu0 %v2028
    %v2217 = vpop.xlane.xlu0 %2216
    %2218 = vadd.xlane.f32.xlu0 %v2029
    %v2219 = vpop.xlane.xlu0 %2218
    %2220 = vadd.xlane.f32.xlu0 %v2030
    %v2221 = vpop.xlane.xlu0 %2220
    %2222 = vadd.xlane.f32.xlu0 %v2031
    %v2223 = vpop.xlane.xlu0 %2222
    %2224 = vadd.xlane.f32.xlu0 %v2032
    %v2225 = vpop.xlane.xlu0 %2224
    %2226 = vadd.xlane.f32.xlu0 %v2033
    %v2227 = vpop.xlane.xlu0 %2226
    %2228 = vadd.xlane.f32.xlu0 %v2034
    %v2229 = vpop.xlane.xlu0 %2228
    %2230 = vadd.xlane.f32.xlu0 %v2035
    %v2231 = vpop.xlane.xlu0 %2230
    %2232 = vadd.xlane.f32.xlu0 %v2036
    %v2233 = vpop.xlane.xlu0 %2232
    %2234 = vadd.xlane.f32.xlu0 %v2037
    %v2235 = vpop.xlane.xlu0 %2234
    %2236 = vadd.xlane.f32.xlu0 %v2038
    %v2237 = vpop.xlane.xlu0 %2236
    %2238 = vadd.xlane.f32.xlu0 %v2039
    %v2239 = vpop.xlane.xlu0 %2238
    %2240 = vadd.xlane.f32.xlu0 %v2040
    %v2241 = vpop.xlane.xlu0 %2240
    %2242 = vadd.xlane.f32.xlu0 %v2041
    %v2243 = vpop.xlane.xlu0 %2242
    %2244 = vadd.xlane.f32.xlu0 %v2042
    %v2245 = vpop.xlane.xlu0 %2244
    %2246 = vadd.xlane.f32.xlu0 %v2043
    %v2247 = vpop.xlane.xlu0 %2246
    %2248 = vadd.xlane.f32.xlu0 %v2044
    %v2249 = vpop.xlane.xlu0 %2248
    %2250 = vadd.xlane.f32.xlu0 %v2045
    %v2251 = vpop.xlane.xlu0 %2250
    %2252 = vadd.xlane.f32.xlu0 %v2046
    %v2253 = vpop.xlane.xlu0 %2252
    %2254 = vadd.xlane.f32.xlu0 %v2047
    %v2255 = vpop.xlane.xlu0 %2254
    %2256 = vadd.xlane.f32.xlu0 %v2048
    %v2257 = vpop.xlane.xlu0 %2256
    %2258 = vadd.xlane.f32.xlu0 %v2049
    %v2259 = vpop.xlane.xlu0 %2258
    %2260 = vadd.xlane.f32.xlu0 %v2050
    %v2261 = vpop.xlane.xlu0 %2260
    %2262 = vadd.xlane.f32.xlu0 %v2051
    %v2263 = vpop.xlane.xlu0 %2262
    %2264 = vadd.xlane.f32.xlu0 %v2052
    %v2265 = vpop.xlane.xlu0 %2264
    %2266 = vadd.xlane.f32.xlu0 %v2053
    %v2267 = vpop.xlane.xlu0 %2266
    %2268 = vadd.xlane.f32.xlu0 %v2054
    %v2269 = vpop.xlane.xlu0 %2268
    %2270 = vadd.xlane.f32.xlu0 %v2055
    %v2271 = vpop.xlane.xlu0 %2270
    %2272 = vadd.xlane.f32.xlu0 %v2056
    %v2273 = vpop.xlane.xlu0 %2272
    %2274 = vadd.xlane.f32.xlu0 %v2057
    %v2275 = vpop.xlane.xlu0 %2274
    %2276 = vadd.xlane.f32.xlu0 %v2058
    %v2277 = vpop.xlane.xlu0 %2276
    %2278 = vadd.xlane.f32.xlu0 %v2059
    %v2279 = vpop.xlane.xlu0 %2278
    %2280 = vadd.xlane.f32.xlu0 %v2060
    %v2281 = vpop.xlane.xlu0 %2280
    %2282 = vadd.xlane.f32.xlu0 %v2061
    %v2283 = vpop.xlane.xlu0 %2282
    %2284 = vadd.xlane.f32.xlu0 %v2062
    %v2285 = vpop.xlane.xlu0 %2284
    %2286 = vadd.xlane.f32.xlu0 %v2063
    %v2287 = vpop.xlane.xlu0 %2286
    %2288 = vadd.xlane.f32.xlu0 %v2064
    %v2289 = vpop.xlane.xlu0 %2288
    %2290 = vadd.xlane.f32.xlu0 %v2065
    %v2291 = vpop.xlane.xlu0 %2290
    %2292 = vadd.xlane.f32.xlu0 %v2066
    %v2293 = vpop.xlane.xlu0 %2292
    %2294 = vadd.xlane.f32.xlu0 %v2067
    %v2295 = vpop.xlane.xlu0 %2294
    %2296 = vadd.xlane.f32.xlu0 %v2068
    %v2297 = vpop.xlane.xlu0 %2296
    %2298 = vadd.xlane.f32.xlu0 %v2069
    %v2299 = vpop.xlane.xlu0 %2298
    %2300 = vadd.xlane.f32.xlu0 %v2070
    %v2301 = vpop.xlane.xlu0 %2300
    %2302 = vadd.xlane.f32.xlu0 %v2071
    %v2303 = vpop.xlane.xlu0 %2302
    %2304 = vadd.xlane.f32.xlu0 %v2072
    %v2305 = vpop.xlane.xlu0 %2304
    %2306 = vadd.xlane.f32.xlu0 %v2073
    %v2307 = vpop.xlane.xlu0 %2306
    %2308 = vadd.xlane.f32.xlu0 %v2074
    %v2309 = vpop.xlane.xlu0 %2308
    %2310 = vadd.xlane.f32.xlu0 %v2075
    %v2311 = vpop.xlane.xlu0 %2310
    %2312 = vadd.xlane.f32.xlu0 %v2076
    %v2313 = vpop.xlane.xlu0 %2312
    %2314 = vadd.xlane.f32.xlu0 %v2077
    %v2315 = vpop.xlane.xlu0 %2314
    %2316 = vadd.xlane.f32.xlu0 %v2078
    %v2317 = vpop.xlane.xlu0 %2316
    %2318 = vadd.xlane.f32.xlu0 %v2079
    %v2319 = vpop.xlane.xlu0 %2318
    %2320 = vadd.xlane.f32.xlu0 %v2080
    %v2321 = vpop.xlane.xlu0 %2320
    %2322 = vadd.xlane.f32.xlu0 %v2081
    %v2323 = vpop.xlane.xlu0 %2322
    %2324 = vadd.xlane.f32.xlu0 %v2082
    %v2325 = vpop.xlane.xlu0 %2324
    %2326 = vadd.xlane.f32.xlu0 %v2083
    %v2327 = vpop.xlane.xlu0 %2326
    %2328 = vadd.xlane.f32.xlu0 %v2084
    %v2329 = vpop.xlane.xlu0 %2328
    %2330 = vadd.xlane.f32.xlu0 %v2085
    %v2331 = vpop.xlane.xlu0 %2330
    %2332 = vadd.xlane.f32.xlu0 %v2086
    %v2333 = vpop.xlane.xlu0 %2332
    %2334 = vadd.xlane.f32.xlu0 %v2087
    %v2335 = vpop.xlane.xlu0 %2334
    %2336 = vadd.xlane.f32.xlu0 %v2088
    %v2337 = vpop.xlane.xlu0 %2336
    %2338 = vadd.xlane.f32.xlu0 %v2089
    %v2339 = vpop.xlane.xlu0 %2338
    %2340 = vadd.xlane.f32.xlu0 %v2090
    %v2341 = vpop.xlane.xlu0 %2340
    %2342 = vadd.xlane.f32.xlu0 %v2091
    %v2343 = vpop.xlane.xlu0 %2342
    %2344 = vadd.xlane.f32.xlu0 %v2092
    %v2345 = vpop.xlane.xlu0 %2344
    %2346 = vadd.xlane.f32.xlu0 %v2093
    %v2347 = vpop.xlane.xlu0 %2346
    %2348 = vadd.xlane.f32.xlu0 %v2094
    %v2349 = vpop.xlane.xlu0 %2348
    %2350 = vadd.xlane.f32.xlu0 %v2095
    %v2351 = vpop.xlane.xlu0 %2350
    %v2353 = vlaneseq
    %v2354 = vshrl.u32 %v2353, 7
    %v2355 = vsub.s32 0, %v2354
    %v2356 = vrot.slane %v94, %v2355
    %2357 = vset.pattern.permute.xlu0 0
    %2358 = vperm.xlu0 %2357, %v2356
    %v2359 = vpop.permute.xlu0 %2358
    %v2361 = vadd.f32 %v2097, %v2359
    %v2362 = vadd.f32 %v2099, %v2359
    %v2363 = vadd.f32 %v2101, %v2359
    %v2364 = vadd.f32 %v2103, %v2359
    %v2365 = vadd.f32 %v2105, %v2359
    %v2366 = vadd.f32 %v2107, %v2359
    %v2367 = vadd.f32 %v2109, %v2359
    %v2368 = vadd.f32 %v2111, %v2359
    %v2369 = vadd.f32 %v2113, %v2359
    %v2370 = vadd.f32 %v2115, %v2359
    %v2371 = vadd.f32 %v2117, %v2359
    %v2372 = vadd.f32 %v2119, %v2359
    %v2373 = vadd.f32 %v2121, %v2359
    %v2374 = vadd.f32 %v2123, %v2359
    %v2375 = vadd.f32 %v2125, %v2359
    %v2376 = vadd.f32 %v2127, %v2359
    %v2377 = vadd.f32 %v2129, %v2359
    %v2378 = vadd.f32 %v2131, %v2359
    %v2379 = vadd.f32 %v2133, %v2359
    %v2380 = vadd.f32 %v2135, %v2359
    %v2381 = vadd.f32 %v2137, %v2359
    %v2382 = vadd.f32 %v2139, %v2359
    %v2383 = vadd.f32 %v2141, %v2359
    %v2384 = vadd.f32 %v2143, %v2359
    %v2385 = vadd.f32 %v2145, %v2359
    %v2386 = vadd.f32 %v2147, %v2359
    %v2387 = vadd.f32 %v2149, %v2359
    %v2388 = vadd.f32 %v2151, %v2359
    %v2389 = vadd.f32 %v2153, %v2359
    %v2390 = vadd.f32 %v2155, %v2359
    %v2391 = vadd.f32 %v2157, %v2359
    %v2392 = vadd.f32 %v2159, %v2359
    %v2393 = vadd.f32 %v2161, %v2359
    %v2394 = vadd.f32 %v2163, %v2359
    %v2395 = vadd.f32 %v2165, %v2359
    %v2396 = vadd.f32 %v2167, %v2359
    %v2397 = vadd.f32 %v2169, %v2359
    %v2398 = vadd.f32 %v2171, %v2359
    %v2399 = vadd.f32 %v2173, %v2359
    %v2400 = vadd.f32 %v2175, %v2359
    %v2401 = vadd.f32 %v2177, %v2359
    %v2402 = vadd.f32 %v2179, %v2359
    %v2403 = vadd.f32 %v2181, %v2359
    %v2404 = vadd.f32 %v2183, %v2359
    %v2405 = vadd.f32 %v2185, %v2359
    %v2406 = vadd.f32 %v2187, %v2359
    %v2407 = vadd.f32 %v2189, %v2359
    %v2408 = vadd.f32 %v2191, %v2359
    %v2409 = vadd.f32 %v2193, %v2359
    %v2410 = vadd.f32 %v2195, %v2359
    %v2411 = vadd.f32 %v2197, %v2359
    %v2412 = vadd.f32 %v2199, %v2359
    %v2413 = vadd.f32 %v2201, %v2359
    %v2414 = vadd.f32 %v2203, %v2359
    %v2415 = vadd.f32 %v2205, %v2359
    %v2416 = vadd.f32 %v2207, %v2359
    %v2417 = vadd.f32 %v2209, %v2359
    %v2418 = vadd.f32 %v2211, %v2359
    %v2419 = vadd.f32 %v2213, %v2359
    %v2420 = vadd.f32 %v2215, %v2359
    %v2421 = vadd.f32 %v2217, %v2359
    %v2422 = vadd.f32 %v2219, %v2359
    %v2423 = vadd.f32 %v2221, %v2359
    %v2424 = vadd.f32 %v2223, %v2359
    %v2425 = vadd.f32 %v2225, %v2359
    %v2426 = vadd.f32 %v2227, %v2359
    %v2427 = vadd.f32 %v2229, %v2359
    %v2428 = vadd.f32 %v2231, %v2359
    %v2429 = vadd.f32 %v2233, %v2359
    %v2430 = vadd.f32 %v2235, %v2359
    %v2431 = vadd.f32 %v2237, %v2359
    %v2432 = vadd.f32 %v2239, %v2359
    %v2433 = vadd.f32 %v2241, %v2359
    %v2434 = vadd.f32 %v2243, %v2359
    %v2435 = vadd.f32 %v2245, %v2359
    %v2436 = vadd.f32 %v2247, %v2359
    %v2437 = vadd.f32 %v2249, %v2359
    %v2438 = vadd.f32 %v2251, %v2359
    %v2439 = vadd.f32 %v2253, %v2359
    %v2440 = vadd.f32 %v2255, %v2359
    %v2441 = vadd.f32 %v2257, %v2359
    %v2442 = vadd.f32 %v2259, %v2359
    %v2443 = vadd.f32 %v2261, %v2359
    %v2444 = vadd.f32 %v2263, %v2359
    %v2445 = vadd.f32 %v2265, %v2359
    %v2446 = vadd.f32 %v2267, %v2359
    %v2447 = vadd.f32 %v2269, %v2359
    %v2448 = vadd.f32 %v2271, %v2359
    %v2449 = vadd.f32 %v2273, %v2359
    %v2450 = vadd.f32 %v2275, %v2359
    %v2451 = vadd.f32 %v2277, %v2359
    %v2452 = vadd.f32 %v2279, %v2359
    %v2453 = vadd.f32 %v2281, %v2359
    %v2454 = vadd.f32 %v2283, %v2359
    %v2455 = vadd.f32 %v2285, %v2359
    %v2456 = vadd.f32 %v2287, %v2359
    %v2457 = vadd.f32 %v2289, %v2359
    %v2458 = vadd.f32 %v2291, %v2359
    %v2459 = vadd.f32 %v2293, %v2359
    %v2460 = vadd.f32 %v2295, %v2359
    %v2461 = vadd.f32 %v2297, %v2359
    %v2462 = vadd.f32 %v2299, %v2359
    %v2463 = vadd.f32 %v2301, %v2359
    %v2464 = vadd.f32 %v2303, %v2359
    %v2465 = vadd.f32 %v2305, %v2359
    %v2466 = vadd.f32 %v2307, %v2359
    %v2467 = vadd.f32 %v2309, %v2359
    %v2468 = vadd.f32 %v2311, %v2359
    %v2469 = vadd.f32 %v2313, %v2359
    %v2470 = vadd.f32 %v2315, %v2359
    %v2471 = vadd.f32 %v2317, %v2359
    %v2472 = vadd.f32 %v2319, %v2359
    %v2473 = vadd.f32 %v2321, %v2359
    %v2474 = vadd.f32 %v2323, %v2359
    %v2475 = vadd.f32 %v2325, %v2359
    %v2476 = vadd.f32 %v2327, %v2359
    %v2477 = vadd.f32 %v2329, %v2359
    %v2478 = vadd.f32 %v2331, %v2359
    %v2479 = vadd.f32 %v2333, %v2359
    %v2480 = vadd.f32 %v2335, %v2359
    %v2481 = vadd.f32 %v2337, %v2359
    %v2482 = vadd.f32 %v2339, %v2359
    %v2483 = vadd.f32 %v2341, %v2359
    %v2484 = vadd.f32 %v2343, %v2359
    %v2485 = vadd.f32 %v2345, %v2359
    %v2486 = vadd.f32 %v2347, %v2359
    %v2487 = vadd.f32 %v2349, %v2359
    %v2488 = vadd.f32 %v2351, %v2359
    %v2617 = vlaneseq
    %v2618 = vand.u32 %v2617, 127
    %v2619 = vlaneseq
    %v2620 = vshrl.u32 %v2619, 7
    %v2621 = vsub.s32 %v2618, %v2620
    %v2622 = vrot.slane %v2361, %v2621
    %v2623 = vadd.s32 %v2618, 4294967288
    %v2624 = vlaneseq
    %v2625 = vshrl.u32 %v2624, 7
    %v2626 = vsub.s32 %v2623, %v2625
    %v2627 = vrot.slane %v2362, %v2626
    %vm2628 = vcmask 130112
    %v2629 = vsel %vm2628, %v2627, %v2622
    %v2630 = vadd.s32 %v2618, 4294967280
    %v2631 = vlaneseq
    %v2632 = vshrl.u32 %v2631, 7
    %v2633 = vsub.s32 %v2630, %v2632
    %v2634 = vrot.slane %v2363, %v2633
    %vm2635 = vcmask 195712
    %v2636 = vsel %vm2635, %v2634, %v2629
    %v2637 = vadd.s32 %v2618, 4294967272
    %v2638 = vlaneseq
    %v2639 = vshrl.u32 %v2638, 7
    %v2640 = vsub.s32 %v2637, %v2639
    %v2641 = vrot.slane %v2364, %v2640
    %vm2642 = vcmask 261312
    %v2643 = vsel %vm2642, %v2641, %v2636
    %v2644 = vadd.s32 %v2618, 4294967264
    %v2645 = vlaneseq
    %v2646 = vshrl.u32 %v2645, 7
    %v2647 = vsub.s32 %v2644, %v2646
    %v2648 = vrot.slane %v2365, %v2647
    %vm2649 = vcmask 326912
    %v2650 = vsel %vm2649, %v2648, %v2643
    %v2651 = vadd.s32 %v2618, 4294967256
    %v2652 = vlaneseq
    %v2653 = vshrl.u32 %v2652, 7
    %v2654 = vsub.s32 %v2651, %v2653
    %v2655 = vrot.slane %v2366, %v2654
    %vm2656 = vcmask 392512
    %v2657 = vsel %vm2656, %v2655, %v2650
    %v2658 = vadd.s32 %v2618, 4294967248
    %v2659 = vlaneseq
    %v2660 = vshrl.u32 %v2659, 7
    %v2661 = vsub.s32 %v2658, %v2660
    %v2662 = vrot.slane %v2367, %v2661
    %vm2663 = vcmask 458112
    %v2664 = vsel %vm2663, %v2662, %v2657
    %v2665 = vadd.s32 %v2618, 4294967240
    %v2666 = vlaneseq
    %v2667 = vshrl.u32 %v2666, 7
    %v2668 = vsub.s32 %v2665, %v2667
    %v2669 = vrot.slane %v2368, %v2668
    %vm2670 = vcmask 523712
    %v2671 = vsel %vm2670, %v2669, %v2664
    %v2672 = vadd.s32 %v2618, 4294967232
    %v2673 = vlaneseq
    %v2674 = vshrl.u32 %v2673, 7
    %v2675 = vsub.s32 %v2672, %v2674
    %v2676 = vrot.slane %v2369, %v2675
    %vm2677 = vcmask 589312
    %v2678 = vsel %vm2677, %v2676, %v2671
    %v2679 = vadd.s32 %v2618, 4294967224
    %v2680 = vlaneseq
    %v2681 = vshrl.u32 %v2680, 7
    %v2682 = vsub.s32 %v2679, %v2681
    %v2683 = vrot.slane %v2370, %v2682
    %vm2684 = vcmask 654912
    %v2685 = vsel %vm2684, %v2683, %v2678
    %v2686 = vadd.s32 %v2618, 4294967216
    %v2687 = vlaneseq
    %v2688 = vshrl.u32 %v2687, 7
    %v2689 = vsub.s32 %v2686, %v2688
    %v2690 = vrot.slane %v2371, %v2689
    %vm2691 = vcmask 720512
    %v2692 = vsel %vm2691, %v2690, %v2685
    %v2693 = vadd.s32 %v2618, 4294967208
    %v2694 = vlaneseq
    %v2695 = vshrl.u32 %v2694, 7
    %v2696 = vsub.s32 %v2693, %v2695
    %v2697 = vrot.slane %v2372, %v2696
    %vm2698 = vcmask 786112
    %v2699 = vsel %vm2698, %v2697, %v2692
    %v2700 = vadd.s32 %v2618, 4294967200
    %v2701 = vlaneseq
    %v2702 = vshrl.u32 %v2701, 7
    %v2703 = vsub.s32 %v2700, %v2702
    %v2704 = vrot.slane %v2373, %v2703
    %vm2705 = vcmask 851712
    %v2706 = vsel %vm2705, %v2704, %v2699
    %v2707 = vadd.s32 %v2618, 4294967192
    %v2708 = vlaneseq
    %v2709 = vshrl.u32 %v2708, 7
    %v2710 = vsub.s32 %v2707, %v2709
    %v2711 = vrot.slane %v2374, %v2710
    %vm2712 = vcmask 917312
    %v2713 = vsel %vm2712, %v2711, %v2706
    %v2714 = vadd.s32 %v2618, 4294967184
    %v2715 = vlaneseq
    %v2716 = vshrl.u32 %v2715, 7
    %v2717 = vsub.s32 %v2714, %v2716
    %v2718 = vrot.slane %v2375, %v2717
    %vm2719 = vcmask 982912
    %v2720 = vsel %vm2719, %v2718, %v2713
    %v2721 = vadd.s32 %v2618, 4294967176
    %v2722 = vlaneseq
    %v2723 = vshrl.u32 %v2722, 7
    %v2724 = vsub.s32 %v2721, %v2723
    %v2725 = vrot.slane %v2376, %v2724
    %vm2726 = vcmask 1048512
    %v2727 = vsel %vm2726, %v2725, %v2720
    %v2728 = vlaneseq
    %v2729 = vshrl.u32 %v2728, 7
    %v2730 = vsub.s32 %v2618, %v2729
    %v2731 = vrot.slane %v2377, %v2730
    %v2732 = vlaneseq
    %v2733 = vshrl.u32 %v2732, 7
    %v2734 = vsub.s32 %v2623, %v2733
    %v2735 = vrot.slane %v2378, %v2734
    %v2736 = vsel %vm2628, %v2735, %v2731
    %v2737 = vlaneseq
    %v2738 = vshrl.u32 %v2737, 7
    %v2739 = vsub.s32 %v2630, %v2738
    %v2740 = vrot.slane %v2379, %v2739
    %v2741 = vsel %vm2635, %v2740, %v2736
    %v2742 = vlaneseq
    %v2743 = vshrl.u32 %v2742, 7
    %v2744 = vsub.s32 %v2637, %v2743
    %v2745 = vrot.slane %v2380, %v2744
    %v2746 = vsel %vm2642, %v2745, %v2741
    %v2747 = vlaneseq
    %v2748 = vshrl.u32 %v2747, 7
    %v2749 = vsub.s32 %v2644, %v2748
    %v2750 = vrot.slane %v2381, %v2749
    %v2751 = vsel %vm2649, %v2750, %v2746
    %v2752 = vlaneseq
    %v2753 = vshrl.u32 %v2752, 7
    %v2754 = vsub.s32 %v2651, %v2753
    %v2755 = vrot.slane %v2382, %v2754
    %v2756 = vsel %vm2656, %v2755, %v2751
    %v2757 = vlaneseq
    %v2758 = vshrl.u32 %v2757, 7
    %v2759 = vsub.s32 %v2658, %v2758
    %v2760 = vrot.slane %v2383, %v2759
    %v2761 = vsel %vm2663, %v2760, %v2756
    %v2762 = vlaneseq
    %v2763 = vshrl.u32 %v2762, 7
    %v2764 = vsub.s32 %v2665, %v2763
    %v2765 = vrot.slane %v2384, %v2764
    %v2766 = vsel %vm2670, %v2765, %v2761
    %v2767 = vlaneseq
    %v2768 = vshrl.u32 %v2767, 7
    %v2769 = vsub.s32 %v2672, %v2768
    %v2770 = vrot.slane %v2385, %v2769
    %v2771 = vsel %vm2677, %v2770, %v2766
    %v2772 = vlaneseq
    %v2773 = vshrl.u32 %v2772, 7
    %v2774 = vsub.s32 %v2679, %v2773
    %v2775 = vrot.slane %v2386, %v2774
    %v2776 = vsel %vm2684, %v2775, %v2771
    %v2777 = vlaneseq
    %v2778 = vshrl.u32 %v2777, 7
    %v2779 = vsub.s32 %v2686, %v2778
    %v2780 = vrot.slane %v2387, %v2779
    %v2781 = vsel %vm2691, %v2780, %v2776
    %v2782 = vlaneseq
    %v2783 = vshrl.u32 %v2782, 7
    %v2784 = vsub.s32 %v2693, %v2783
    %v2785 = vrot.slane %v2388, %v2784
    %v2786 = vsel %vm2698, %v2785, %v2781
    %v2787 = vlaneseq
    %v2788 = vshrl.u32 %v2787, 7
    %v2789 = vsub.s32 %v2700, %v2788
    %v2790 = vrot.slane %v2389, %v2789
    %v2791 = vsel %vm2705, %v2790, %v2786
    %v2792 = vlaneseq
    %v2793 = vshrl.u32 %v2792, 7
    %v2794 = vsub.s32 %v2707, %v2793
    %v2795 = vrot.slane %v2390, %v2794
    %v2796 = vsel %vm2712, %v2795, %v2791
    %v2797 = vlaneseq
    %v2798 = vshrl.u32 %v2797, 7
    %v2799 = vsub.s32 %v2714, %v2798
    %v2800 = vrot.slane %v2391, %v2799
    %v2801 = vsel %vm2719, %v2800, %v2796
    %v2802 = vlaneseq
    %v2803 = vshrl.u32 %v2802, 7
    %v2804 = vsub.s32 %v2721, %v2803
    %v2805 = vrot.slane %v2392, %v2804
    %v2806 = vsel %vm2726, %v2805, %v2801
    %v2807 = vlaneseq
    %v2808 = vshrl.u32 %v2807, 7
    %v2809 = vsub.s32 %v2618, %v2808
    %v2810 = vrot.slane %v2393, %v2809
    %v2811 = vlaneseq
    %v2812 = vshrl.u32 %v2811, 7
    %v2813 = vsub.s32 %v2623, %v2812
    %v2814 = vrot.slane %v2394, %v2813
    %v2815 = vsel %vm2628, %v2814, %v2810
    %v2816 = vlaneseq
    %v2817 = vshrl.u32 %v2816, 7
    %v2818 = vsub.s32 %v2630, %v2817
    %v2819 = vrot.slane %v2395, %v2818
    %v2820 = vsel %vm2635, %v2819, %v2815
    %v2821 = vlaneseq
    %v2822 = vshrl.u32 %v2821, 7
    %v2823 = vsub.s32 %v2637, %v2822
    %v2824 = vrot.slane %v2396, %v2823
    %v2825 = vsel %vm2642, %v2824, %v2820
    %v2826 = vlaneseq
    %v2827 = vshrl.u32 %v2826, 7
    %v2828 = vsub.s32 %v2644, %v2827
    %v2829 = vrot.slane %v2397, %v2828
    %v2830 = vsel %vm2649, %v2829, %v2825
    %v2831 = vlaneseq
    %v2832 = vshrl.u32 %v2831, 7
    %v2833 = vsub.s32 %v2651, %v2832
    %v2834 = vrot.slane %v2398, %v2833
    %v2835 = vsel %vm2656, %v2834, %v2830
    %v2836 = vlaneseq
    %v2837 = vshrl.u32 %v2836, 7
    %v2838 = vsub.s32 %v2658, %v2837
    %v2839 = vrot.slane %v2399, %v2838
    %v2840 = vsel %vm2663, %v2839, %v2835
    %v2841 = vlaneseq
    %v2842 = vshrl.u32 %v2841, 7
    %v2843 = vsub.s32 %v2665, %v2842
    %v2844 = vrot.slane %v2400, %v2843
    %v2845 = vsel %vm2670, %v2844, %v2840
    %v2846 = vlaneseq
    %v2847 = vshrl.u32 %v2846, 7
    %v2848 = vsub.s32 %v2672, %v2847
    %v2849 = vrot.slane %v2401, %v2848
    %v2850 = vsel %vm2677, %v2849, %v2845
    %v2851 = vlaneseq
    %v2852 = vshrl.u32 %v2851, 7
    %v2853 = vsub.s32 %v2679, %v2852
    %v2854 = vrot.slane %v2402, %v2853
    %v2855 = vsel %vm2684, %v2854, %v2850
    %v2856 = vlaneseq
    %v2857 = vshrl.u32 %v2856, 7
    %v2858 = vsub.s32 %v2686, %v2857
    %v2859 = vrot.slane %v2403, %v2858
    %v2860 = vsel %vm2691, %v2859, %v2855
    %v2861 = vlaneseq
    %v2862 = vshrl.u32 %v2861, 7
    %v2863 = vsub.s32 %v2693, %v2862
    %v2864 = vrot.slane %v2404, %v2863
    %v2865 = vsel %vm2698, %v2864, %v2860
    %v2866 = vlaneseq
    %v2867 = vshrl.u32 %v2866, 7
    %v2868 = vsub.s32 %v2700, %v2867
    %v2869 = vrot.slane %v2405, %v2868
    %v2870 = vsel %vm2705, %v2869, %v2865
    %v2871 = vlaneseq
    %v2872 = vshrl.u32 %v2871, 7
    %v2873 = vsub.s32 %v2707, %v2872
    %v2874 = vrot.slane %v2406, %v2873
    %v2875 = vsel %vm2712, %v2874, %v2870
    %v2876 = vlaneseq
    %v2877 = vshrl.u32 %v2876, 7
    %v2878 = vsub.s32 %v2714, %v2877
    %v2879 = vrot.slane %v2407, %v2878
    %v2880 = vsel %vm2719, %v2879, %v2875
    %v2881 = vlaneseq
    %v2882 = vshrl.u32 %v2881, 7
    %v2883 = vsub.s32 %v2721, %v2882
    %v2884 = vrot.slane %v2408, %v2883
    %v2885 = vsel %vm2726, %v2884, %v2880
    %v2886 = vlaneseq
    %v2887 = vshrl.u32 %v2886, 7
    %v2888 = vsub.s32 %v2618, %v2887
    %v2889 = vrot.slane %v2409, %v2888
    %v2890 = vlaneseq
    %v2891 = vshrl.u32 %v2890, 7
    %v2892 = vsub.s32 %v2623, %v2891
    %v2893 = vrot.slane %v2410, %v2892
    %v2894 = vsel %vm2628, %v2893, %v2889
    %v2895 = vlaneseq
    %v2896 = vshrl.u32 %v2895, 7
    %v2897 = vsub.s32 %v2630, %v2896
    %v2898 = vrot.slane %v2411, %v2897
    %v2899 = vsel %vm2635, %v2898, %v2894
    %v2900 = vlaneseq
    %v2901 = vshrl.u32 %v2900, 7
    %v2902 = vsub.s32 %v2637, %v2901
    %v2903 = vrot.slane %v2412, %v2902
    %v2904 = vsel %vm2642, %v2903, %v2899
    %v2905 = vlaneseq
    %v2906 = vshrl.u32 %v2905, 7
    %v2907 = vsub.s32 %v2644, %v2906
    %v2908 = vrot.slane %v2413, %v2907
    %v2909 = vsel %vm2649, %v2908, %v2904
    %v2910 = vlaneseq
    %v2911 = vshrl.u32 %v2910, 7
    %v2912 = vsub.s32 %v2651, %v2911
    %v2913 = vrot.slane %v2414, %v2912
    %v2914 = vsel %vm2656, %v2913, %v2909
    %v2915 = vlaneseq
    %v2916 = vshrl.u32 %v2915, 7
    %v2917 = vsub.s32 %v2658, %v2916
    %v2918 = vrot.slane %v2415, %v2917
    %v2919 = vsel %vm2663, %v2918, %v2914
    %v2920 = vlaneseq
    %v2921 = vshrl.u32 %v2920, 7
    %v2922 = vsub.s32 %v2665, %v2921
    %v2923 = vrot.slane %v2416, %v2922
    %v2924 = vsel %vm2670, %v2923, %v2919
    %v2925 = vlaneseq
    %v2926 = vshrl.u32 %v2925, 7
    %v2927 = vsub.s32 %v2672, %v2926
    %v2928 = vrot.slane %v2417, %v2927
    %v2929 = vsel %vm2677, %v2928, %v2924
    %v2930 = vlaneseq
    %v2931 = vshrl.u32 %v2930, 7
    %v2932 = vsub.s32 %v2679, %v2931
    %v2933 = vrot.slane %v2418, %v2932
    %v2934 = vsel %vm2684, %v2933, %v2929
    %v2935 = vlaneseq
    %v2936 = vshrl.u32 %v2935, 7
    %v2937 = vsub.s32 %v2686, %v2936
    %v2938 = vrot.slane %v2419, %v2937
    %v2939 = vsel %vm2691, %v2938, %v2934
    %v2940 = vlaneseq
    %v2941 = vshrl.u32 %v2940, 7
    %v2942 = vsub.s32 %v2693, %v2941
    %v2943 = vrot.slane %v2420, %v2942
    %v2944 = vsel %vm2698, %v2943, %v2939
    %v2945 = vlaneseq
    %v2946 = vshrl.u32 %v2945, 7
    %v2947 = vsub.s32 %v2700, %v2946
    %v2948 = vrot.slane %v2421, %v2947
    %v2949 = vsel %vm2705, %v2948, %v2944
    %v2950 = vlaneseq
    %v2951 = vshrl.u32 %v2950, 7
    %v2952 = vsub.s32 %v2707, %v2951
    %v2953 = vrot.slane %v2422, %v2952
    %v2954 = vsel %vm2712, %v2953, %v2949
    %v2955 = vlaneseq
    %v2956 = vshrl.u32 %v2955, 7
    %v2957 = vsub.s32 %v2714, %v2956
    %v2958 = vrot.slane %v2423, %v2957
    %v2959 = vsel %vm2719, %v2958, %v2954
    %v2960 = vlaneseq
    %v2961 = vshrl.u32 %v2960, 7
    %v2962 = vsub.s32 %v2721, %v2961
    %v2963 = vrot.slane %v2424, %v2962
    %v2964 = vsel %vm2726, %v2963, %v2959
    %v2965 = vlaneseq
    %v2966 = vshrl.u32 %v2965, 7
    %v2967 = vsub.s32 %v2618, %v2966
    %v2968 = vrot.slane %v2425, %v2967
    %v2969 = vlaneseq
    %v2970 = vshrl.u32 %v2969, 7
    %v2971 = vsub.s32 %v2623, %v2970
    %v2972 = vrot.slane %v2426, %v2971
    %v2973 = vsel %vm2628, %v2972, %v2968
    %v2974 = vlaneseq
    %v2975 = vshrl.u32 %v2974, 7
    %v2976 = vsub.s32 %v2630, %v2975
    %v2977 = vrot.slane %v2427, %v2976
    %v2978 = vsel %vm2635, %v2977, %v2973
    %v2979 = vlaneseq
    %v2980 = vshrl.u32 %v2979, 7
    %v2981 = vsub.s32 %v2637, %v2980
    %v2982 = vrot.slane %v2428, %v2981
    %v2983 = vsel %vm2642, %v2982, %v2978
    %v2984 = vlaneseq
    %v2985 = vshrl.u32 %v2984, 7
    %v2986 = vsub.s32 %v2644, %v2985
    %v2987 = vrot.slane %v2429, %v2986
    %v2988 = vsel %vm2649, %v2987, %v2983
    %v2989 = vlaneseq
    %v2990 = vshrl.u32 %v2989, 7
    %v2991 = vsub.s32 %v2651, %v2990
    %v2992 = vrot.slane %v2430, %v2991
    %v2993 = vsel %vm2656, %v2992, %v2988
    %v2994 = vlaneseq
    %v2995 = vshrl.u32 %v2994, 7
    %v2996 = vsub.s32 %v2658, %v2995
    %v2997 = vrot.slane %v2431, %v2996
    %v2998 = vsel %vm2663, %v2997, %v2993
    %v2999 = vlaneseq
    %v3000 = vshrl.u32 %v2999, 7
    %v3001 = vsub.s32 %v2665, %v3000
    %v3002 = vrot.slane %v2432, %v3001
    %v3003 = vsel %vm2670, %v3002, %v2998
    %v3004 = vlaneseq
    %v3005 = vshrl.u32 %v3004, 7
    %v3006 = vsub.s32 %v2672, %v3005
    %v3007 = vrot.slane %v2433, %v3006
    %v3008 = vsel %vm2677, %v3007, %v3003
    %v3009 = vlaneseq
    %v3010 = vshrl.u32 %v3009, 7
    %v3011 = vsub.s32 %v2679, %v3010
    %v3012 = vrot.slane %v2434, %v3011
    %v3013 = vsel %vm2684, %v3012, %v3008
    %v3014 = vlaneseq
    %v3015 = vshrl.u32 %v3014, 7
    %v3016 = vsub.s32 %v2686, %v3015
    %v3017 = vrot.slane %v2435, %v3016
    %v3018 = vsel %vm2691, %v3017, %v3013
    %v3019 = vlaneseq
    %v3020 = vshrl.u32 %v3019, 7
    %v3021 = vsub.s32 %v2693, %v3020
    %v3022 = vrot.slane %v2436, %v3021
    %v3023 = vsel %vm2698, %v3022, %v3018
    %v3024 = vlaneseq
    %v3025 = vshrl.u32 %v3024, 7
    %v3026 = vsub.s32 %v2700, %v3025
    %v3027 = vrot.slane %v2437, %v3026
    %v3028 = vsel %vm2705, %v3027, %v3023
    %v3029 = vlaneseq
    %v3030 = vshrl.u32 %v3029, 7
    %v3031 = vsub.s32 %v2707, %v3030
    %v3032 = vrot.slane %v2438, %v3031
    %v3033 = vsel %vm2712, %v3032, %v3028
    %v3034 = vlaneseq
    %v3035 = vshrl.u32 %v3034, 7
    %v3036 = vsub.s32 %v2714, %v3035
    %v3037 = vrot.slane %v2439, %v3036
    %v3038 = vsel %vm2719, %v3037, %v3033
    %v3039 = vlaneseq
    %v3040 = vshrl.u32 %v3039, 7
    %v3041 = vsub.s32 %v2721, %v3040
    %v3042 = vrot.slane %v2440, %v3041
    %v3043 = vsel %vm2726, %v3042, %v3038
    %v3044 = vlaneseq
    %v3045 = vshrl.u32 %v3044, 7
    %v3046 = vsub.s32 %v2618, %v3045
    %v3047 = vrot.slane %v2441, %v3046
    %v3048 = vlaneseq
    %v3049 = vshrl.u32 %v3048, 7
    %v3050 = vsub.s32 %v2623, %v3049
    %v3051 = vrot.slane %v2442, %v3050
    %v3052 = vsel %vm2628, %v3051, %v3047
    %v3053 = vlaneseq
    %v3054 = vshrl.u32 %v3053, 7
    %v3055 = vsub.s32 %v2630, %v3054
    %v3056 = vrot.slane %v2443, %v3055
    %v3057 = vsel %vm2635, %v3056, %v3052
    %v3058 = vlaneseq
    %v3059 = vshrl.u32 %v3058, 7
    %v3060 = vsub.s32 %v2637, %v3059
    %v3061 = vrot.slane %v2444, %v3060
    %v3062 = vsel %vm2642, %v3061, %v3057
    %v3063 = vlaneseq
    %v3064 = vshrl.u32 %v3063, 7
    %v3065 = vsub.s32 %v2644, %v3064
    %v3066 = vrot.slane %v2445, %v3065
    %v3067 = vsel %vm2649, %v3066, %v3062
    %v3068 = vlaneseq
    %v3069 = vshrl.u32 %v3068, 7
    %v3070 = vsub.s32 %v2651, %v3069
    %v3071 = vrot.slane %v2446, %v3070
    %v3072 = vsel %vm2656, %v3071, %v3067
    %v3073 = vlaneseq
    %v3074 = vshrl.u32 %v3073, 7
    %v3075 = vsub.s32 %v2658, %v3074
    %v3076 = vrot.slane %v2447, %v3075
    %v3077 = vsel %vm2663, %v3076, %v3072
    %v3078 = vlaneseq
    %v3079 = vshrl.u32 %v3078, 7
    %v3080 = vsub.s32 %v2665, %v3079
    %v3081 = vrot.slane %v2448, %v3080
    %v3082 = vsel %vm2670, %v3081, %v3077
    %v3083 = vlaneseq
    %v3084 = vshrl.u32 %v3083, 7
    %v3085 = vsub.s32 %v2672, %v3084
    %v3086 = vrot.slane %v2449, %v3085
    %v3087 = vsel %vm2677, %v3086, %v3082
    %v3088 = vlaneseq
    %v3089 = vshrl.u32 %v3088, 7
    %v3090 = vsub.s32 %v2679, %v3089
    %v3091 = vrot.slane %v2450, %v3090
    %v3092 = vsel %vm2684, %v3091, %v3087
    %v3093 = vlaneseq
    %v3094 = vshrl.u32 %v3093, 7
    %v3095 = vsub.s32 %v2686, %v3094
    %v3096 = vrot.slane %v2451, %v3095
    %v3097 = vsel %vm2691, %v3096, %v3092
    %v3098 = vlaneseq
    %v3099 = vshrl.u32 %v3098, 7
    %v3100 = vsub.s32 %v2693, %v3099
    %v3101 = vrot.slane %v2452, %v3100
    %v3102 = vsel %vm2698, %v3101, %v3097
    %v3103 = vlaneseq
    %v3104 = vshrl.u32 %v3103, 7
    %v3105 = vsub.s32 %v2700, %v3104
    %v3106 = vrot.slane %v2453, %v3105
    %v3107 = vsel %vm2705, %v3106, %v3102
    %v3108 = vlaneseq
    %v3109 = vshrl.u32 %v3108, 7
    %v3110 = vsub.s32 %v2707, %v3109
    %v3111 = vrot.slane %v2454, %v3110
    %v3112 = vsel %vm2712, %v3111, %v3107
    %v3113 = vlaneseq
    %v3114 = vshrl.u32 %v3113, 7
    %v3115 = vsub.s32 %v2714, %v3114
    %v3116 = vrot.slane %v2455, %v3115
    %v3117 = vsel %vm2719, %v3116, %v3112
    %v3118 = vlaneseq
    %v3119 = vshrl.u32 %v3118, 7
    %v3120 = vsub.s32 %v2721, %v3119
    %v3121 = vrot.slane %v2456, %v3120
    %v3122 = vsel %vm2726, %v3121, %v3117
    %v3123 = vlaneseq
    %v3124 = vshrl.u32 %v3123, 7
    %v3125 = vsub.s32 %v2618, %v3124
    %v3126 = vrot.slane %v2457, %v3125
    %v3127 = vlaneseq
    %v3128 = vshrl.u32 %v3127, 7
    %v3129 = vsub.s32 %v2623, %v3128
    %v3130 = vrot.slane %v2458, %v3129
    %v3131 = vsel %vm2628, %v3130, %v3126
    %v3132 = vlaneseq
    %v3133 = vshrl.u32 %v3132, 7
    %v3134 = vsub.s32 %v2630, %v3133
    %v3135 = vrot.slane %v2459, %v3134
    %v3136 = vsel %vm2635, %v3135, %v3131
    %v3137 = vlaneseq
    %v3138 = vshrl.u32 %v3137, 7
    %v3139 = vsub.s32 %v2637, %v3138
    %v3140 = vrot.slane %v2460, %v3139
    %v3141 = vsel %vm2642, %v3140, %v3136
    %v3142 = vlaneseq
    %v3143 = vshrl.u32 %v3142, 7
    %v3144 = vsub.s32 %v2644, %v3143
    %v3145 = vrot.slane %v2461, %v3144
    %v3146 = vsel %vm2649, %v3145, %v3141
    %v3147 = vlaneseq
    %v3148 = vshrl.u32 %v3147, 7
    %v3149 = vsub.s32 %v2651, %v3148
    %v3150 = vrot.slane %v2462, %v3149
    %v3151 = vsel %vm2656, %v3150, %v3146
    %v3152 = vlaneseq
    %v3153 = vshrl.u32 %v3152, 7
    %v3154 = vsub.s32 %v2658, %v3153
    %v3155 = vrot.slane %v2463, %v3154
    %v3156 = vsel %vm2663, %v3155, %v3151
    %v3157 = vlaneseq
    %v3158 = vshrl.u32 %v3157, 7
    %v3159 = vsub.s32 %v2665, %v3158
    %v3160 = vrot.slane %v2464, %v3159
    %v3161 = vsel %vm2670, %v3160, %v3156
    %v3162 = vlaneseq
    %v3163 = vshrl.u32 %v3162, 7
    %v3164 = vsub.s32 %v2672, %v3163
    %v3165 = vrot.slane %v2465, %v3164
    %v3166 = vsel %vm2677, %v3165, %v3161
    %v3167 = vlaneseq
    %v3168 = vshrl.u32 %v3167, 7
    %v3169 = vsub.s32 %v2679, %v3168
    %v3170 = vrot.slane %v2466, %v3169
    %v3171 = vsel %vm2684, %v3170, %v3166
    %v3172 = vlaneseq
    %v3173 = vshrl.u32 %v3172, 7
    %v3174 = vsub.s32 %v2686, %v3173
    %v3175 = vrot.slane %v2467, %v3174
    %v3176 = vsel %vm2691, %v3175, %v3171
    %v3177 = vlaneseq
    %v3178 = vshrl.u32 %v3177, 7
    %v3179 = vsub.s32 %v2693, %v3178
    %v3180 = vrot.slane %v2468, %v3179
    %v3181 = vsel %vm2698, %v3180, %v3176
    %v3182 = vlaneseq
    %v3183 = vshrl.u32 %v3182, 7
    %v3184 = vsub.s32 %v2700, %v3183
    %v3185 = vrot.slane %v2469, %v3184
    %v3186 = vsel %vm2705, %v3185, %v3181
    %v3187 = vlaneseq
    %v3188 = vshrl.u32 %v3187, 7
    %v3189 = vsub.s32 %v2707, %v3188
    %v3190 = vrot.slane %v2470, %v3189
    %v3191 = vsel %vm2712, %v3190, %v3186
    %v3192 = vlaneseq
    %v3193 = vshrl.u32 %v3192, 7
    %v3194 = vsub.s32 %v2714, %v3193
    %v3195 = vrot.slane %v2471, %v3194
    %v3196 = vsel %vm2719, %v3195, %v3191
    %v3197 = vlaneseq
    %v3198 = vshrl.u32 %v3197, 7
    %v3199 = vsub.s32 %v2721, %v3198
    %v3200 = vrot.slane %v2472, %v3199
    %v3201 = vsel %vm2726, %v3200, %v3196
    %v3202 = vlaneseq
    %v3203 = vshrl.u32 %v3202, 7
    %v3204 = vsub.s32 %v2618, %v3203
    %v3205 = vrot.slane %v2473, %v3204
    %v3206 = vlaneseq
    %v3207 = vshrl.u32 %v3206, 7
    %v3208 = vsub.s32 %v2623, %v3207
    %v3209 = vrot.slane %v2474, %v3208
    %v3210 = vsel %vm2628, %v3209, %v3205
    %v3211 = vlaneseq
    %v3212 = vshrl.u32 %v3211, 7
    %v3213 = vsub.s32 %v2630, %v3212
    %v3214 = vrot.slane %v2475, %v3213
    %v3215 = vsel %vm2635, %v3214, %v3210
    %v3216 = vlaneseq
    %v3217 = vshrl.u32 %v3216, 7
    %v3218 = vsub.s32 %v2637, %v3217
    %v3219 = vrot.slane %v2476, %v3218
    %v3220 = vsel %vm2642, %v3219, %v3215
    %v3221 = vlaneseq
    %v3222 = vshrl.u32 %v3221, 7
    %v3223 = vsub.s32 %v2644, %v3222
    %v3224 = vrot.slane %v2477, %v3223
    %v3225 = vsel %vm2649, %v3224, %v3220
    %v3226 = vlaneseq
    %v3227 = vshrl.u32 %v3226, 7
    %v3228 = vsub.s32 %v2651, %v3227
    %v3229 = vrot.slane %v2478, %v3228
    %v3230 = vsel %vm2656, %v3229, %v3225
    %v3231 = vlaneseq
    %v3232 = vshrl.u32 %v3231, 7
    %v3233 = vsub.s32 %v2658, %v3232
    %v3234 = vrot.slane %v2479, %v3233
    %v3235 = vsel %vm2663, %v3234, %v3230
    %v3236 = vlaneseq
    %v3237 = vshrl.u32 %v3236, 7
    %v3238 = vsub.s32 %v2665, %v3237
    %v3239 = vrot.slane %v2480, %v3238
    %v3240 = vsel %vm2670, %v3239, %v3235
    %v3241 = vlaneseq
    %v3242 = vshrl.u32 %v3241, 7
    %v3243 = vsub.s32 %v2672, %v3242
    %v3244 = vrot.slane %v2481, %v3243
    %v3245 = vsel %vm2677, %v3244, %v3240
    %v3246 = vlaneseq
    %v3247 = vshrl.u32 %v3246, 7
    %v3248 = vsub.s32 %v2679, %v3247
    %v3249 = vrot.slane %v2482, %v3248
    %v3250 = vsel %vm2684, %v3249, %v3245
    %v3251 = vlaneseq
    %v3252 = vshrl.u32 %v3251, 7
    %v3253 = vsub.s32 %v2686, %v3252
    %v3254 = vrot.slane %v2483, %v3253
    %v3255 = vsel %vm2691, %v3254, %v3250
    %v3256 = vlaneseq
    %v3257 = vshrl.u32 %v3256, 7
    %v3258 = vsub.s32 %v2693, %v3257
    %v3259 = vrot.slane %v2484, %v3258
    %v3260 = vsel %vm2698, %v3259, %v3255
    %v3261 = vlaneseq
    %v3262 = vshrl.u32 %v3261, 7
    %v3263 = vsub.s32 %v2700, %v3262
    %v3264 = vrot.slane %v2485, %v3263
    %v3265 = vsel %vm2705, %v3264, %v3260
    %v3266 = vlaneseq
    %v3267 = vshrl.u32 %v3266, 7
    %v3268 = vsub.s32 %v2707, %v3267
    %v3269 = vrot.slane %v2486, %v3268
    %v3270 = vsel %vm2712, %v3269, %v3265
    %v3271 = vlaneseq
    %v3272 = vshrl.u32 %v3271, 7
    %v3273 = vsub.s32 %v2714, %v3272
    %v3274 = vrot.slane %v2487, %v3273
    %v3275 = vsel %vm2719, %v3274, %v3270
    %v3276 = vlaneseq
    %v3277 = vshrl.u32 %v3276, 7
    %v3278 = vsub.s32 %v2721, %v3277
    %v3279 = vrot.slane %v2488, %v3278
    %v3280 = vsel %vm2726, %v3279, %v3275
    %vm3281 = vcmask 1041409
    %v3282 = vsel %vm3281, %v2806, %v2727
    %vm3283 = vcmask 1042434
    %v3284 = vsel %vm3283, %v2885, %v3282
    %vm3285 = vcmask 1043459
    %v3286 = vsel %vm3285, %v2964, %v3284
    %vm3287 = vcmask 1044484
    %v3288 = vsel %vm3287, %v3043, %v3286
    %vm3289 = vcmask 1045509
    %v3290 = vsel %vm3289, %v3122, %v3288
    %vm3291 = vcmask 1046534
    %v3292 = vsel %vm3291, %v3201, %v3290
    %vm3293 = vcmask 1047559
    %v3294 = vsel %vm3293, %v3280, %v3292
    %3296 = vst [vmem:[#allocation9] sm:$0xff] %v3294
    // Predicated region
    $region42: #{tpu_custom_call.1} parent=1 // pred_check
      _
    $region43: #{tpu_custom_call.1} parent=1 // pred_check_branch
      %3298 = sbr.rel (0) target = $region45
    $region44: #{tpu_custom_call.1} parent=1 // pred_region
      %s3300 = ssub.s32 128, 128
      %3301 = vsyncadd [#allocation5], %s3300
      %s3303 = sshll.u32 [#allocation9], 4
      %s3304 = int_to_ptr.vmem [resolvable:$true] %s3303
      %3306 = dma.vmem_to_hbm [thread:$0]  %s3304, 128, %s7, [#allocation5]
    $region45: #{tpu_custom_call.1} parent=1 // pred_fallthru
      _
    // Predicated region
    $region46: #{tpu_custom_call.1} parent=1 // pred_check
      _
    $region47: #{tpu_custom_call.1} parent=1 // pred_check_branch
      %3308 = sbr.rel (0) target = $region49
    $region48: #{tpu_custom_call.1} parent=1 // pred_region
      %3309 = dma.done [#allocation5], 128
    $region49: #{tpu_custom_call.1} parent=1 // pred_fallthru
      _
    %3310 = vsyncpa [#allocation4], 1
    %3311 = vsyncpa [#allocation7], 1
    %3312 = vsyncpa [#allocation5], 1

</llo_original>
